<compile_context>
chip_gen: v7x
topology: tpu7x:2x2x1
jax: 0.10.0
libtpu: 0.0.40
codegen_flags: <defaults>
</compile_context>

<pallas_src>
import jax
import jax.numpy as jnp
import numpy as np
from jax.experimental import pallas as pl
from jax.experimental.pallas import tpu as pltpu


def rnn_kernel(gi_ref,    # (T, tb, 3S)  pre-computed input-gate pre-activations (f32)
               h0_ref,    # (tb, S)      initial hidden state (f32)
               whh_ref,   # (S, 3S)      fused hidden-side gate weights [r|z|n] (matmul dtype)
               bhn_ref,   # (1, S)       hidden-side bias of the n gate (f32)
               wh_ref,    # (T*S, tv)    head weight block, streamed over V grid axis
               bh_ref,    # (1, tv)      head bias block (f32)
               out_ref,   # (tb, tv)     logits block (f32)
               hs_ref):   # (tb, T*S)    VMEM scratch: flattened hidden states
    T = gi_ref.shape[0]
    S = h0_ref.shape[1]
    mm_dtype = whh_ref.dtype

    # ---- Phase 1: GRU recurrence -- only once per batch block (first V block).
    @pl.when(pl.program_id(1) == 0)
    def _():
        whh = whh_ref[...]                                       # (S, 3S)
        bhn_b = jnp.broadcast_to(bhn_ref[...], h0_ref.shape)     # hoisted out of loop
        h = h0_ref[...]                                          # (tb, S) f32 carry

        def gru_step(gi, h):
            # single fused hidden-side matmul per step (r,z,n in one MXU op),
            # bf16 operands / f32 accumulation when matmul_dtype=bf16.
            gh = jnp.dot(h.astype(mm_dtype), whh,
                         preferred_element_type=jnp.float32)
            r = jax.nn.sigmoid(gi[:, 0:S] + gh[:, 0:S])
            z = jax.nn.sigmoid(gi[:, S:2 * S] + gh[:, S:2 * S])
            n = jnp.tanh(gi[:, 2 * S:3 * S] + r * (gh[:, 2 * S:3 * S] + bhn_b))
            return (1.0 - z) * n + z * h

        if T <= 32:
            # Small T: full unroll, static column slices into the flat scratch.
            for t in range(T):
                h = gru_step(gi_ref[t], h)
                hs_ref[:, t * S:(t + 1) * S] = h.astype(hs_ref.dtype)
        else:
            # Production T: bounded unroll keeps vreg pressure / compile time sane.
            def body(t, h):
                h = gru_step(gi_ref[t], h)
                hs_ref[:, pl.ds(pl.multiple_of(t * S, S), S)] = h.astype(hs_ref.dtype)
                return h
            h = jax.lax.fori_loop(0, T, body, h, unroll=4)

    # ---- Phase 2: head = Flatten(1,2) + Linear as ONE (tb, T*S) @ (T*S, tv) matmul.
    out_ref[...] = (jnp.dot(hs_ref[...], wh_ref[...],
                            preferred_element_type=jnp.float32)
                    + bh_ref[...]).astype(out_ref.dtype)


def _largest_tile(n, candidates):
    for c in candidates:
        if n % c == 0:
            return c
    return n


def rnn_forward(x_tokens, params, *, matmul_dtype=jnp.float32):
    emb = params["embedding"]                     # (V, E)
    B, T = x_tokens.shape
    S = params["state"].shape[1]
    V = emb.shape[0]

    # ---- JAX glue: embedding gather + hoisted input-gate projection,
    #      emitted directly in (T, B, 3S) layout (no separate transpose pass).
    xt = jnp.take(emb, x_tokens, axis=0)          # (B, T, E)
    b_fold = params["b_ih"] + jnp.concatenate(
        [params["b_hh"][:2 * S], jnp.zeros((S,), params["b_hh"].dtype)])
    gi = (jnp.einsum("bte,ge->tbg", xt, params["w_ih"]) + b_fold).astype(jnp.float32)

    h0 = jnp.broadcast_to(params["state"], (B, S)).astype(jnp.float32)
    whh = params["w_hh"].T.astype(matmul_dtype)   # (S, 3S), gate order r|z|n
    bhn = params["b_hh"][2 * S:][None, :].astype(jnp.float32)   # (1, S)

    # Lane-dense head: pad output width to a multiple of 128 (unmasked vst),
    # slice the padding off after the call.
    Vp = max(128, ((V + 127) // 128) * 128)
    wh = jnp.pad(params["w_head"].T, ((0, 0), (0, Vp - V))).astype(matmul_dtype)  # (T*S, Vp)
    bh = jnp.pad(params["b_head"], (0, Vp - V))[None, :].astype(jnp.float32)      # (1, Vp)

    # ---- Tiling: fill MXU rows with tb (up to 256) when B allows; tv lane-dense.
    #      On v7x, large B automatically yields nb >= 2 so the "parallel" batch
    #      axis shards across both TensorCores.
    tb = _largest_tile(B, (256, 128, 64, 32, 16, 8))
    nb = B // tb
    tv = _largest_tile(Vp, (512, 256, 128))
    nv = Vp // tv
    three_s = 3 * S

    # ---- VMEM budget (double-buffered BlockSpec inputs + scratch); cap at
    #      64 MiB so the same setting is valid on v7x (raise on v5e/v6e if needed).
    f32b = 4
    mmb = jnp.dtype(matmul_dtype).itemsize
    vmem_need = (2 * T * tb * three_s * f32b      # gi
                 + 2 * tb * S * f32b              # h0
                 + 2 * S * three_s * mmb          # whh
                 + 2 * T * S * tv * mmb           # wh
                 + 2 * tb * tv * f32b             # out
                 + tb * T * S * mmb               # hs scratch
                 + (1 << 20))                     # headroom
    vmem_limit = max(32 << 20, min(2 * vmem_need, 64 << 20))

    grid_spec = pltpu.PrefetchScalarGridSpec(
        num_scalar_prefetch=0,
        grid=(nb, nv),
        in_specs=[
            pl.BlockSpec((T, tb, three_s), lambda i, j: (0, i, 0)),   # gi
            pl.BlockSpec((tb, S), lambda i, j: (i, 0)),               # h0
            pl.BlockSpec((S, three_s), lambda i, j: (0, 0)),          # whh (shared)
            pl.BlockSpec((1, S), lambda i, j: (0, 0)),                # bhn (shared)
            pl.BlockSpec((T * S, tv), lambda i, j: (0, j)),           # wh  (streamed over V)
            pl.BlockSpec((1, tv), lambda i, j: (0, j)),               # bh
        ],
        out_specs=pl.BlockSpec((tb, tv), lambda i, j: (i, j)),
        scratch_shapes=[pltpu.VMEM((tb, T * S), matmul_dtype)],       # hidden states
    )

    out = pl.pallas_call(
        rnn_kernel,
        out_shape=jax.ShapeDtypeStruct((B, Vp), jnp.float32),
        grid_spec=grid_spec,
        compiler_params=pltpu.CompilerParams(
            # V axis MUST stay innermost + "arbitrary": j=0 runs the recurrence
            # that j>0 blocks consume from the hs scratch.
            dimension_semantics=("parallel", "arbitrary"),
            vmem_limit_bytes=int(vmem_limit)),
    )(gi, h0, whh, bhn, wh, bh)
    return out[:, :V]


def rnn_reference(x_tokens, params):
    """Pure-JAX reference mirroring the PyTorch forward."""
    emb = params["embedding"]
    B, T = x_tokens.shape
    S = params["state"].shape[1]
    xt = jnp.take(emb, x_tokens, axis=0)          # (B, T, E)
    h = jnp.broadcast_to(params["state"], (B, S))
    hs = []
    for t in range(T):
        x = xt[:, t, :]
        gi = x @ params["w_ih"].T + params["b_ih"]
        gh = h @ params["w_hh"].T + params["b_hh"]
        ir, iz, inn = jnp.split(gi, 3, axis=1)
        hr, hz, hn = jnp.split(gh, 3, axis=1)
        r = jax.nn.sigmoid(ir + hr)
        z = jax.nn.sigmoid(iz + hz)
        n = jnp.tanh(inn + r * hn)
        h = (1.0 - z) * n + z * h
        hs.append(h)
    flat = jnp.stack(hs, 1).reshape(B, T * S)
    return flat @ params["w_head"].T + params["b_head"]


def init_params(key, time_dim, token_dim, embed_dim, state_dim):
    ks = jax.random.split(key, 6)
    s = 0.1
    return {
        "state": jnp.zeros((1, state_dim), jnp.float32),  # learnable init state (zeros at init)
        "embedding": s * jax.random.normal(ks[0], (token_dim, embed_dim), jnp.float32),
        "w_ih": s * jax.random.normal(ks[1], (3 * state_dim, embed_dim), jnp.float32),
        "w_hh": s * jax.random.normal(ks[2], (3 * state_dim, state_dim), jnp.float32),
        "b_ih": s * jax.random.normal(ks[3], (3 * state_dim,), jnp.float32),
        "b_hh": s * jax.random.normal(ks[4], (3 * state_dim,), jnp.float32),
        "w_head": s * jax.random.normal(ks[5], (token_dim, time_dim * state_dim), jnp.float32),
        "b_head": jnp.zeros((token_dim,), jnp.float32),
    }


if __name__ == "__main__":
    B, T, V, E, S = 2, 8, 16, 32, 32   # batch, time_dim, token_dim, embed_dim, state_dim
    key = jax.random.PRNGKey(0)
    kx, kp = jax.random.split(key)
    x = jax.random.randint(kx, (B, T), 0, V, dtype=jnp.int32)
    params = init_params(kp, T, V, E, S)

    # f32 matmul path for exact parity at demo sizes; pass matmul_dtype=jnp.bfloat16
    # for the bf16-operand / f32-accumulate production path on v5e/v6e/v7x.
    out = jax.block_until_ready(rnn_forward(x, params, matmul_dtype=jnp.float32))
    ref = rnn_reference(x, params)
    np.testing.assert_allclose(np.asarray(out), np.asarray(ref), rtol=1e-4, atol=1e-5)
    print("KERNEL_OK")
</pallas_src>

<mosaic_0001>
module attributes {stable_mosaic.version = 11 : i64} {
  func.func @rnn_kernel(%arg0: i32, %arg1: i32, %arg2: memref<8x2x96xf32, #tpu.memory_space<vmem>>, %arg3: memref<2x32xf32, #tpu.memory_space<vmem>>, %arg4: memref<32x96xf32, #tpu.memory_space<vmem>>, %arg5: memref<1x32xf32, #tpu.memory_space<vmem>>, %arg6: memref<256x128xf32, #tpu.memory_space<vmem>>, %arg7: memref<1x128xf32, #tpu.memory_space<vmem>>, %arg8: memref<2x128xf32, #tpu.memory_space<vmem>>, %arg9: memref<2x256xf32, #tpu.memory_space<vmem>>) attributes {dimension_semantics = [#tpu.dimension_semantics<parallel>, #tpu.dimension_semantics<arbitrary>], iteration_bounds = array<i64: 1, 1>, scalar_prefetch = 0 : i64, scratch_operands = 1 : i64, tpu.core_type = #tpu.core_type<tc>, window_params = [{transform_indices = @transform_0, window_bounds = array<i64: 8, 2, 96>}, {transform_indices = @transform_1, window_bounds = array<i64: 2, 32>}, {pipeline_mode = #tpu.pipeline_mode<synchronous>, transform_indices = @transform_2, window_bounds = array<i64: 32, 96>}, {pipeline_mode = #tpu.pipeline_mode<synchronous>, transform_indices = @transform_3, window_bounds = array<i64: 1, 32>}, {transform_indices = @transform_4, window_bounds = array<i64: 256, 128>}, {transform_indices = @transform_5, window_bounds = array<i64: 1, 128>}, {transform_indices = @transform_6, window_bounds = array<i64: 2, 128>}]} {
    %c0_i32 = arith.constant 0 : i32
    %0 = arith.cmpi eq, %arg1, %c0_i32 : i32
    %1 = arith.extui %0 : i1 to i32
    %c0_i32_0 = arith.constant 0 : i32
    %2 = arith.cmpi ne, %1, %c0_i32_0 : i32
    scf.if %2 {
      %c0_8 = arith.constant 0 : index
      %c0_9 = arith.constant 0 : index
      %10 = vector.load %arg4[%c0_8, %c0_9] : memref<32x96xf32, #tpu.memory_space<vmem>>, vector<32x96xf32>
      %c0_10 = arith.constant 0 : index
      %c0_11 = arith.constant 0 : index
      %11 = vector.load %arg5[%c0_10, %c0_11] : memref<1x32xf32, #tpu.memory_space<vmem>>, vector<1x32xf32>
      %12 = vector.shape_cast %11 : vector<1x32xf32> to vector<1x32xf32>
      %13 = vector.broadcast %12 : vector<1x32xf32> to vector<2x32xf32>
      %c0_12 = arith.constant 0 : index
      %c0_13 = arith.constant 0 : index
      %14 = vector.load %arg3[%c0_12, %c0_13] : memref<2x32xf32, #tpu.memory_space<vmem>>, vector<2x32xf32>
      %c0_14 = arith.constant 0 : index
      %c0_15 = arith.constant 0 : index
      %c0_16 = arith.constant 0 : index
      %15 = vector.load %arg2[%c0_14, %c0_15, %c0_16] : memref<8x2x96xf32, #tpu.memory_space<vmem>>, vector<1x2x96xf32>
      %16 = vector.shape_cast %15 : vector<1x2x96xf32> to vector<2x96xf32>
      %cst_17 = arith.constant dense<0.000000e+00> : vector<2x96xf32>
      %17 = tpu.matmul %14, %10, %cst_17 {dimension_numbers = #tpu.dot_dimension_numbers<[1], [0], [0], [1], [0, 0, 1, 1], [], []>} : vector<2x32xf32>, vector<32x96xf32>, vector<2x96xf32> -> vector<2x96xf32>
      %18 = vector.extract_strided_slice %16 {offsets = [0, 0], sizes = [2, 32], strides = [1, 1]} : vector<2x96xf32> to vector<2x32xf32>
      %19 = vector.extract_strided_slice %17 {offsets = [0, 0], sizes = [2, 32], strides = [1, 1]} : vector<2x96xf32> to vector<2x32xf32>
      %20 = arith.addf %18, %19 : vector<2x32xf32>
      %21 = arith.negf %20 : vector<2x32xf32>
      %22 = math.exp %21 : vector<2x32xf32>
      %cst_18 = arith.constant 1.000000e+00 : f32
      %23 = vector.broadcast %cst_18 : f32 to vector<2x32xf32>
      %24 = arith.addf %23, %22 : vector<2x32xf32>
      %25 = arith.divf %23, %24 : vector<2x32xf32>
      %26 = vector.extract_strided_slice %16 {offsets = [0, 32], sizes = [2, 32], strides = [1, 1]} : vector<2x96xf32> to vector<2x32xf32>
      %27 = vector.extract_strided_slice %17 {offsets = [0, 32], sizes = [2, 32], strides = [1, 1]} : vector<2x96xf32> to vector<2x32xf32>
      %28 = arith.addf %26, %27 : vector<2x32xf32>
      %29 = arith.negf %28 : vector<2x32xf32>
      %30 = math.exp %29 : vector<2x32xf32>
      %cst_19 = arith.constant 1.000000e+00 : f32
      %31 = vector.broadcast %cst_19 : f32 to vector<2x32xf32>
      %32 = arith.addf %31, %30 : vector<2x32xf32>
      %33 = arith.divf %31, %32 : vector<2x32xf32>
      %34 = vector.extract_strided_slice %16 {offsets = [0, 64], sizes = [2, 32], strides = [1, 1]} : vector<2x96xf32> to vector<2x32xf32>
      %35 = vector.extract_strided_slice %17 {offsets = [0, 64], sizes = [2, 32], strides = [1, 1]} : vector<2x96xf32> to vector<2x32xf32>
      %36 = arith.addf %35, %13 : vector<2x32xf32>
      %37 = arith.mulf %25, %36 : vector<2x32xf32>
      %38 = arith.addf %34, %37 : vector<2x32xf32>
      %39 = math.tanh %38 : vector<2x32xf32>
      %cst_20 = arith.constant 1.000000e+00 : f32
      %40 = vector.broadcast %cst_20 : f32 to vector<2x32xf32>
      %41 = arith.subf %40, %33 : vector<2x32xf32>
      %42 = arith.mulf %41, %39 : vector<2x32xf32>
      %43 = arith.mulf %33, %14 : vector<2x32xf32>
      %44 = arith.addf %42, %43 : vector<2x32xf32>
      %c0_21 = arith.constant 0 : index
      %c0_22 = arith.constant 0 : index
      %45 = vector.load %arg9[%c0_21, %c0_22] : memref<2x256xf32, #tpu.memory_space<vmem>>, vector<2x32xf32>
      tpu.vector_store %arg9[%c0_21, %c0_22], %44 {strides = array<i32>} : memref<2x256xf32, #tpu.memory_space<vmem>>, vector<2x32xf32>,
      %c1 = arith.constant 1 : index
      %c0_23 = arith.constant 0 : index
      %c0_24 = arith.constant 0 : index
      %46 = vector.load %arg2[%c1, %c0_23, %c0_24] : memref<8x2x96xf32, #tpu.memory_space<vmem>>, vector<1x2x96xf32>
      %47 = vector.shape_cast %46 : vector<1x2x96xf32> to vector<2x96xf32>
      %cst_25 = arith.constant dense<0.000000e+00> : vector<2x96xf32>
      %48 = tpu.matmul %44, %10, %cst_25 {dimension_numbers = #tpu.dot_dimension_numbers<[1], [0], [0], [1], [0, 0, 1, 1], [], []>} : vector<2x32xf32>, vector<32x96xf32>, vector<2x96xf32> -> vector<2x96xf32>
      %49 = vector.extract_strided_slice %47 {offsets = [0, 0], sizes = [2, 32], strides = [1, 1]} : vector<2x96xf32> to vector<2x32xf32>
      %50 = vector.extract_strided_slice %48 {offsets = [0, 0], sizes = [2, 32], strides = [1, 1]} : vector<2x96xf32> to vector<2x32xf32>
      %51 = arith.addf %49, %50 : vector<2x32xf32>
      %52 = arith.negf %51 : vector<2x32xf32>
      %53 = math.exp %52 : vector<2x32xf32>
      %cst_26 = arith.constant 1.000000e+00 : f32
      %54 = vector.broadcast %cst_26 : f32 to vector<2x32xf32>
      %55 = arith.addf %54, %53 : vector<2x32xf32>
      %56 = arith.divf %54, %55 : vector<2x32xf32>
      %57 = vector.extract_strided_slice %47 {offsets = [0, 32], sizes = [2, 32], strides = [1, 1]} : vector<2x96xf32> to vector<2x32xf32>
      %58 = vector.extract_strided_slice %48 {offsets = [0, 32], sizes = [2, 32], strides = [1, 1]} : vector<2x96xf32> to vector<2x32xf32>
      %59 = arith.addf %57, %58 : vector<2x32xf32>
      %60 = arith.negf %59 : vector<2x32xf32>
      %61 = math.exp %60 : vector<2x32xf32>
      %cst_27 = arith.constant 1.000000e+00 : f32
      %62 = vector.broadcast %cst_27 : f32 to vector<2x32xf32>
      %63 = arith.addf %62, %61 : vector<2x32xf32>
      %64 = arith.divf %62, %63 : vector<2x32xf32>
      %65 = vector.extract_strided_slice %47 {offsets = [0, 64], sizes = [2, 32], strides = [1, 1]} : vector<2x96xf32> to vector<2x32xf32>
      %66 = vector.extract_strided_slice %48 {offsets = [0, 64], sizes = [2, 32], strides = [1, 1]} : vector<2x96xf32> to vector<2x32xf32>
      %67 = arith.addf %66, %13 : vector<2x32xf32>
      %68 = arith.mulf %56, %67 : vector<2x32xf32>
      %69 = arith.addf %65, %68 : vector<2x32xf32>
      %70 = math.tanh %69 : vector<2x32xf32>
      %cst_28 = arith.constant 1.000000e+00 : f32
      %71 = vector.broadcast %cst_28 : f32 to vector<2x32xf32>
      %72 = arith.subf %71, %64 : vector<2x32xf32>
      %73 = arith.mulf %72, %70 : vector<2x32xf32>
      %74 = arith.mulf %64, %44 : vector<2x32xf32>
      %75 = arith.addf %73, %74 : vector<2x32xf32>
      %c0_29 = arith.constant 0 : index
      %c32 = arith.constant 32 : index
      %76 = vector.load %arg9[%c0_29, %c32] : memref<2x256xf32, #tpu.memory_space<vmem>>, vector<2x32xf32>
      tpu.vector_store %arg9[%c0_29, %c32], %75 {strides = array<i32>} : memref<2x256xf32, #tpu.memory_space<vmem>>, vector<2x32xf32>,
      %c2 = arith.constant 2 : index
      %c0_30 = arith.constant 0 : index
      %c0_31 = arith.constant 0 : index
      %77 = vector.load %arg2[%c2, %c0_30, %c0_31] : memref<8x2x96xf32, #tpu.memory_space<vmem>>, vector<1x2x96xf32>
      %78 = vector.shape_cast %77 : vector<1x2x96xf32> to vector<2x96xf32>
      %cst_32 = arith.constant dense<0.000000e+00> : vector<2x96xf32>
      %79 = tpu.matmul %75, %10, %cst_32 {dimension_numbers = #tpu.dot_dimension_numbers<[1], [0], [0], [1], [0, 0, 1, 1], [], []>} : vector<2x32xf32>, vector<32x96xf32>, vector<2x96xf32> -> vector<2x96xf32>
      %80 = vector.extract_strided_slice %78 {offsets = [0, 0], sizes = [2, 32], strides = [1, 1]} : vector<2x96xf32> to vector<2x32xf32>
      %81 = vector.extract_strided_slice %79 {offsets = [0, 0], sizes = [2, 32], strides = [1, 1]} : vector<2x96xf32> to vector<2x32xf32>
      %82 = arith.addf %80, %81 : vector<2x32xf32>
      %83 = arith.negf %82 : vector<2x32xf32>
      %84 = math.exp %83 : vector<2x32xf32>
      %cst_33 = arith.constant 1.000000e+00 : f32
      %85 = vector.broadcast %cst_33 : f32 to vector<2x32xf32>
      %86 = arith.addf %85, %84 : vector<2x32xf32>
      %87 = arith.divf %85, %86 : vector<2x32xf32>
      %88 = vector.extract_strided_slice %78 {offsets = [0, 32], sizes = [2, 32], strides = [1, 1]} : vector<2x96xf32> to vector<2x32xf32>
      %89 = vector.extract_strided_slice %79 {offsets = [0, 32], sizes = [2, 32], strides = [1, 1]} : vector<2x96xf32> to vector<2x32xf32>
      %90 = arith.addf %88, %89 : vector<2x32xf32>
      %91 = arith.negf %90 : vector<2x32xf32>
      %92 = math.exp %91 : vector<2x32xf32>
      %cst_34 = arith.constant 1.000000e+00 : f32
      %93 = vector.broadcast %cst_34 : f32 to vector<2x32xf32>
      %94 = arith.addf %93, %92 : vector<2x32xf32>
      %95 = arith.divf %93, %94 : vector<2x32xf32>
      %96 = vector.extract_strided_slice %78 {offsets = [0, 64], sizes = [2, 32], strides = [1, 1]} : vector<2x96xf32> to vector<2x32xf32>
      %97 = vector.extract_strided_slice %79 {offsets = [0, 64], sizes = [2, 32], strides = [1, 1]} : vector<2x96xf32> to vector<2x32xf32>
      %98 = arith.addf %97, %13 : vector<2x32xf32>
      %99 = arith.mulf %87, %98 : vector<2x32xf32>
      %100 = arith.addf %96, %99 : vector<2x32xf32>
      %101 = math.tanh %100 : vector<2x32xf32>
      %cst_35 = arith.constant 1.000000e+00 : f32
      %102 = vector.broadcast %cst_35 : f32 to vector<2x32xf32>
      %103 = arith.subf %102, %95 : vector<2x32xf32>
      %104 = arith.mulf %103, %101 : vector<2x32xf32>
      %105 = arith.mulf %95, %75 : vector<2x32xf32>
      %106 = arith.addf %104, %105 : vector<2x32xf32>
      %c0_36 = arith.constant 0 : index
      %c64 = arith.constant 64 : index
      %107 = vector.load %arg9[%c0_36, %c64] : memref<2x256xf32, #tpu.memory_space<vmem>>, vector<2x32xf32>
      tpu.vector_store %arg9[%c0_36, %c64], %106 {strides = array<i32>} : memref<2x256xf32, #tpu.memory_space<vmem>>, vector<2x32xf32>,
      %c3 = arith.constant 3 : index
      %c0_37 = arith.constant 0 : index
      %c0_38 = arith.constant 0 : index
      %108 = vector.load %arg2[%c3, %c0_37, %c0_38] : memref<8x2x96xf32, #tpu.memory_space<vmem>>, vector<1x2x96xf32>
      %109 = vector.shape_cast %108 : vector<1x2x96xf32> to vector<2x96xf32>
      %cst_39 = arith.constant dense<0.000000e+00> : vector<2x96xf32>
      %110 = tpu.matmul %106, %10, %cst_39 {dimension_numbers = #tpu.dot_dimension_numbers<[1], [0], [0], [1], [0, 0, 1, 1], [], []>} : vector<2x32xf32>, vector<32x96xf32>, vector<2x96xf32> -> vector<2x96xf32>
      %111 = vector.extract_strided_slice %109 {offsets = [0, 0], sizes = [2, 32], strides = [1, 1]} : vector<2x96xf32> to vector<2x32xf32>
      %112 = vector.extract_strided_slice %110 {offsets = [0, 0], sizes = [2, 32], strides = [1, 1]} : vector<2x96xf32> to vector<2x32xf32>
      %113 = arith.addf %111, %112 : vector<2x32xf32>
      %114 = arith.negf %113 : vector<2x32xf32>
      %115 = math.exp %114 : vector<2x32xf32>
      %cst_40 = arith.constant 1.000000e+00 : f32
      %116 = vector.broadcast %cst_40 : f32 to vector<2x32xf32>
      %117 = arith.addf %116, %115 : vector<2x32xf32>
      %118 = arith.divf %116, %117 : vector<2x32xf32>
      %119 = vector.extract_strided_slice %109 {offsets = [0, 32], sizes = [2, 32], strides = [1, 1]} : vector<2x96xf32> to vector<2x32xf32>
      %120 = vector.extract_strided_slice %110 {offsets = [0, 32], sizes = [2, 32], strides = [1, 1]} : vector<2x96xf32> to vector<2x32xf32>
      %121 = arith.addf %119, %120 : vector<2x32xf32>
      %122 = arith.negf %121 : vector<2x32xf32>
      %123 = math.exp %122 : vector<2x32xf32>
      %cst_41 = arith.constant 1.000000e+00 : f32
      %124 = vector.broadcast %cst_41 : f32 to vector<2x32xf32>
      %125 = arith.addf %124, %123 : vector<2x32xf32>
      %126 = arith.divf %124, %125 : vector<2x32xf32>
      %127 = vector.extract_strided_slice %109 {offsets = [0, 64], sizes = [2, 32], strides = [1, 1]} : vector<2x96xf32> to vector<2x32xf32>
      %128 = vector.extract_strided_slice %110 {offsets = [0, 64], sizes = [2, 32], strides = [1, 1]} : vector<2x96xf32> to vector<2x32xf32>
      %129 = arith.addf %128, %13 : vector<2x32xf32>
      %130 = arith.mulf %118, %129 : vector<2x32xf32>
      %131 = arith.addf %127, %130 : vector<2x32xf32>
      %132 = math.tanh %131 : vector<2x32xf32>
      %cst_42 = arith.constant 1.000000e+00 : f32
      %133 = vector.broadcast %cst_42 : f32 to vector<2x32xf32>
      %134 = arith.subf %133, %126 : vector<2x32xf32>
      %135 = arith.mulf %134, %132 : vector<2x32xf32>
      %136 = arith.mulf %126, %106 : vector<2x32xf32>
      %137 = arith.addf %135, %136 : vector<2x32xf32>
      %c0_43 = arith.constant 0 : index
      %c96 = arith.constant 96 : index
      %138 = vector.load %arg9[%c0_43, %c96] : memref<2x256xf32, #tpu.memory_space<vmem>>, vector<2x32xf32>
      tpu.vector_store %arg9[%c0_43, %c96], %137 {strides = array<i32>} : memref<2x256xf32, #tpu.memory_space<vmem>>, vector<2x32xf32>,
      %c4 = arith.constant 4 : index
      %c0_44 = arith.constant 0 : index
      %c0_45 = arith.constant 0 : index
      %139 = vector.load %arg2[%c4, %c0_44, %c0_45] : memref<8x2x96xf32, #tpu.memory_space<vmem>>, vector<1x2x96xf32>
      %140 = vector.shape_cast %139 : vector<1x2x96xf32> to vector<2x96xf32>
      %cst_46 = arith.constant dense<0.000000e+00> : vector<2x96xf32>
      %141 = tpu.matmul %137, %10, %cst_46 {dimension_numbers = #tpu.dot_dimension_numbers<[1], [0], [0], [1], [0, 0, 1, 1], [], []>} : vector<2x32xf32>, vector<32x96xf32>, vector<2x96xf32> -> vector<2x96xf32>
      %142 = vector.extract_strided_slice %140 {offsets = [0, 0], sizes = [2, 32], strides = [1, 1]} : vector<2x96xf32> to vector<2x32xf32>
      %143 = vector.extract_strided_slice %141 {offsets = [0, 0], sizes = [2, 32], strides = [1, 1]} : vector<2x96xf32> to vector<2x32xf32>
      %144 = arith.addf %142, %143 : vector<2x32xf32>
      %145 = arith.negf %144 : vector<2x32xf32>
      %146 = math.exp %145 : vector<2x32xf32>
      %cst_47 = arith.constant 1.000000e+00 : f32
      %147 = vector.broadcast %cst_47 : f32 to vector<2x32xf32>
      %148 = arith.addf %147, %146 : vector<2x32xf32>
      %149 = arith.divf %147, %148 : vector<2x32xf32>
      %150 = vector.extract_strided_slice %140 {offsets = [0, 32], sizes = [2, 32], strides = [1, 1]} : vector<2x96xf32> to vector<2x32xf32>
      %151 = vector.extract_strided_slice %141 {offsets = [0, 32], sizes = [2, 32], strides = [1, 1]} : vector<2x96xf32> to vector<2x32xf32>
      %152 = arith.addf %150, %151 : vector<2x32xf32>
      %153 = arith.negf %152 : vector<2x32xf32>
      %154 = math.exp %153 : vector<2x32xf32>
      %cst_48 = arith.constant 1.000000e+00 : f32
      %155 = vector.broadcast %cst_48 : f32 to vector<2x32xf32>
      %156 = arith.addf %155, %154 : vector<2x32xf32>
      %157 = arith.divf %155, %156 : vector<2x32xf32>
      %158 = vector.extract_strided_slice %140 {offsets = [0, 64], sizes = [2, 32], strides = [1, 1]} : vector<2x96xf32> to vector<2x32xf32>
      %159 = vector.extract_strided_slice %141 {offsets = [0, 64], sizes = [2, 32], strides = [1, 1]} : vector<2x96xf32> to vector<2x32xf32>
      %160 = arith.addf %159, %13 : vector<2x32xf32>
      %161 = arith.mulf %149, %160 : vector<2x32xf32>
      %162 = arith.addf %158, %161 : vector<2x32xf32>
      %163 = math.tanh %162 : vector<2x32xf32>
      %cst_49 = arith.constant 1.000000e+00 : f32
      %164 = vector.broadcast %cst_49 : f32 to vector<2x32xf32>
      %165 = arith.subf %164, %157 : vector<2x32xf32>
      %166 = arith.mulf %165, %163 : vector<2x32xf32>
      %167 = arith.mulf %157, %137 : vector<2x32xf32>
      %168 = arith.addf %166, %167 : vector<2x32xf32>
      %c0_50 = arith.constant 0 : index
      %c128 = arith.constant 128 : index
      %169 = vector.load %arg9[%c0_50, %c128] : memref<2x256xf32, #tpu.memory_space<vmem>>, vector<2x32xf32>
      tpu.vector_store %arg9[%c0_50, %c128], %168 {strides = array<i32>} : memref<2x256xf32, #tpu.memory_space<vmem>>, vector<2x32xf32>,
      %c5 = arith.constant 5 : index
      %c0_51 = arith.constant 0 : index
      %c0_52 = arith.constant 0 : index
      %170 = vector.load %arg2[%c5, %c0_51, %c0_52] : memref<8x2x96xf32, #tpu.memory_space<vmem>>, vector<1x2x96xf32>
      %171 = vector.shape_cast %170 : vector<1x2x96xf32> to vector<2x96xf32>
      %cst_53 = arith.constant dense<0.000000e+00> : vector<2x96xf32>
      %172 = tpu.matmul %168, %10, %cst_53 {dimension_numbers = #tpu.dot_dimension_numbers<[1], [0], [0], [1], [0, 0, 1, 1], [], []>} : vector<2x32xf32>, vector<32x96xf32>, vector<2x96xf32> -> vector<2x96xf32>
      %173 = vector.extract_strided_slice %171 {offsets = [0, 0], sizes = [2, 32], strides = [1, 1]} : vector<2x96xf32> to vector<2x32xf32>
      %174 = vector.extract_strided_slice %172 {offsets = [0, 0], sizes = [2, 32], strides = [1, 1]} : vector<2x96xf32> to vector<2x32xf32>
      %175 = arith.addf %173, %174 : vector<2x32xf32>
      %176 = arith.negf %175 : vector<2x32xf32>
      %177 = math.exp %176 : vector<2x32xf32>
      %cst_54 = arith.constant 1.000000e+00 : f32
      %178 = vector.broadcast %cst_54 : f32 to vector<2x32xf32>
      %179 = arith.addf %178, %177 : vector<2x32xf32>
      %180 = arith.divf %178, %179 : vector<2x32xf32>
      %181 = vector.extract_strided_slice %171 {offsets = [0, 32], sizes = [2, 32], strides = [1, 1]} : vector<2x96xf32> to vector<2x32xf32>
      %182 = vector.extract_strided_slice %172 {offsets = [0, 32], sizes = [2, 32], strides = [1, 1]} : vector<2x96xf32> to vector<2x32xf32>
      %183 = arith.addf %181, %182 : vector<2x32xf32>
      %184 = arith.negf %183 : vector<2x32xf32>
      %185 = math.exp %184 : vector<2x32xf32>
      %cst_55 = arith.constant 1.000000e+00 : f32
      %186 = vector.broadcast %cst_55 : f32 to vector<2x32xf32>
      %187 = arith.addf %186, %185 : vector<2x32xf32>
      %188 = arith.divf %186, %187 : vector<2x32xf32>
      %189 = vector.extract_strided_slice %171 {offsets = [0, 64], sizes = [2, 32], strides = [1, 1]} : vector<2x96xf32> to vector<2x32xf32>
      %190 = vector.extract_strided_slice %172 {offsets = [0, 64], sizes = [2, 32], strides = [1, 1]} : vector<2x96xf32> to vector<2x32xf32>
      %191 = arith.addf %190, %13 : vector<2x32xf32>
      %192 = arith.mulf %180, %191 : vector<2x32xf32>
      %193 = arith.addf %189, %192 : vector<2x32xf32>
      %194 = math.tanh %193 : vector<2x32xf32>
      %cst_56 = arith.constant 1.000000e+00 : f32
      %195 = vector.broadcast %cst_56 : f32 to vector<2x32xf32>
      %196 = arith.subf %195, %188 : vector<2x32xf32>
      %197 = arith.mulf %196, %194 : vector<2x32xf32>
      %198 = arith.mulf %188, %168 : vector<2x32xf32>
      %199 = arith.addf %197, %198 : vector<2x32xf32>
      %c0_57 = arith.constant 0 : index
      %c160 = arith.constant 160 : index
      %200 = vector.load %arg9[%c0_57, %c160] : memref<2x256xf32, #tpu.memory_space<vmem>>, vector<2x32xf32>
      tpu.vector_store %arg9[%c0_57, %c160], %199 {strides = array<i32>} : memref<2x256xf32, #tpu.memory_space<vmem>>, vector<2x32xf32>,
      %c6 = arith.constant 6 : index
      %c0_58 = arith.constant 0 : index
      %c0_59 = arith.constant 0 : index
      %201 = vector.load %arg2[%c6, %c0_58, %c0_59] : memref<8x2x96xf32, #tpu.memory_space<vmem>>, vector<1x2x96xf32>
      %202 = vector.shape_cast %201 : vector<1x2x96xf32> to vector<2x96xf32>
      %cst_60 = arith.constant dense<0.000000e+00> : vector<2x96xf32>
      %203 = tpu.matmul %199, %10, %cst_60 {dimension_numbers = #tpu.dot_dimension_numbers<[1], [0], [0], [1], [0, 0, 1, 1], [], []>} : vector<2x32xf32>, vector<32x96xf32>, vector<2x96xf32> -> vector<2x96xf32>
      %204 = vector.extract_strided_slice %202 {offsets = [0, 0], sizes = [2, 32], strides = [1, 1]} : vector<2x96xf32> to vector<2x32xf32>
      %205 = vector.extract_strided_slice %203 {offsets = [0, 0], sizes = [2, 32], strides = [1, 1]} : vector<2x96xf32> to vector<2x32xf32>
      %206 = arith.addf %204, %205 : vector<2x32xf32>
      %207 = arith.negf %206 : vector<2x32xf32>
      %208 = math.exp %207 : vector<2x32xf32>
      %cst_61 = arith.constant 1.000000e+00 : f32
      %209 = vector.broadcast %cst_61 : f32 to vector<2x32xf32>
      %210 = arith.addf %209, %208 : vector<2x32xf32>
      %211 = arith.divf %209, %210 : vector<2x32xf32>
      %212 = vector.extract_strided_slice %202 {offsets = [0, 32], sizes = [2, 32], strides = [1, 1]} : vector<2x96xf32> to vector<2x32xf32>
      %213 = vector.extract_strided_slice %203 {offsets = [0, 32], sizes = [2, 32], strides = [1, 1]} : vector<2x96xf32> to vector<2x32xf32>
      %214 = arith.addf %212, %213 : vector<2x32xf32>
      %215 = arith.negf %214 : vector<2x32xf32>
      %216 = math.exp %215 : vector<2x32xf32>
      %cst_62 = arith.constant 1.000000e+00 : f32
      %217 = vector.broadcast %cst_62 : f32 to vector<2x32xf32>
      %218 = arith.addf %217, %216 : vector<2x32xf32>
      %219 = arith.divf %217, %218 : vector<2x32xf32>
      %220 = vector.extract_strided_slice %202 {offsets = [0, 64], sizes = [2, 32], strides = [1, 1]} : vector<2x96xf32> to vector<2x32xf32>
      %221 = vector.extract_strided_slice %203 {offsets = [0, 64], sizes = [2, 32], strides = [1, 1]} : vector<2x96xf32> to vector<2x32xf32>
      %222 = arith.addf %221, %13 : vector<2x32xf32>
      %223 = arith.mulf %211, %222 : vector<2x32xf32>
      %224 = arith.addf %220, %223 : vector<2x32xf32>
      %225 = math.tanh %224 : vector<2x32xf32>
      %cst_63 = arith.constant 1.000000e+00 : f32
      %226 = vector.broadcast %cst_63 : f32 to vector<2x32xf32>
      %227 = arith.subf %226, %219 : vector<2x32xf32>
      %228 = arith.mulf %227, %225 : vector<2x32xf32>
      %229 = arith.mulf %219, %199 : vector<2x32xf32>
      %230 = arith.addf %228, %229 : vector<2x32xf32>
      %c0_64 = arith.constant 0 : index
      %c192 = arith.constant 192 : index
      %231 = vector.load %arg9[%c0_64, %c192] : memref<2x256xf32, #tpu.memory_space<vmem>>, vector<2x32xf32>
      tpu.vector_store %arg9[%c0_64, %c192], %230 {strides = array<i32>} : memref<2x256xf32, #tpu.memory_space<vmem>>, vector<2x32xf32>,
      %c7 = arith.constant 7 : index
      %c0_65 = arith.constant 0 : index
      %c0_66 = arith.constant 0 : index
      %232 = vector.load %arg2[%c7, %c0_65, %c0_66] : memref<8x2x96xf32, #tpu.memory_space<vmem>>, vector<1x2x96xf32>
      %233 = vector.shape_cast %232 : vector<1x2x96xf32> to vector<2x96xf32>
      %cst_67 = arith.constant dense<0.000000e+00> : vector<2x96xf32>
      %234 = tpu.matmul %230, %10, %cst_67 {dimension_numbers = #tpu.dot_dimension_numbers<[1], [0], [0], [1], [0, 0, 1, 1], [], []>} : vector<2x32xf32>, vector<32x96xf32>, vector<2x96xf32> -> vector<2x96xf32>
      %235 = vector.extract_strided_slice %233 {offsets = [0, 0], sizes = [2, 32], strides = [1, 1]} : vector<2x96xf32> to vector<2x32xf32>
      %236 = vector.extract_strided_slice %234 {offsets = [0, 0], sizes = [2, 32], strides = [1, 1]} : vector<2x96xf32> to vector<2x32xf32>
      %237 = arith.addf %235, %236 : vector<2x32xf32>
      %238 = arith.negf %237 : vector<2x32xf32>
      %239 = math.exp %238 : vector<2x32xf32>
      %cst_68 = arith.constant 1.000000e+00 : f32
      %240 = vector.broadcast %cst_68 : f32 to vector<2x32xf32>
      %241 = arith.addf %240, %239 : vector<2x32xf32>
      %242 = arith.divf %240, %241 : vector<2x32xf32>
      %243 = vector.extract_strided_slice %233 {offsets = [0, 32], sizes = [2, 32], strides = [1, 1]} : vector<2x96xf32> to vector<2x32xf32>
      %244 = vector.extract_strided_slice %234 {offsets = [0, 32], sizes = [2, 32], strides = [1, 1]} : vector<2x96xf32> to vector<2x32xf32>
      %245 = arith.addf %243, %244 : vector<2x32xf32>
      %246 = arith.negf %245 : vector<2x32xf32>
      %247 = math.exp %246 : vector<2x32xf32>
      %cst_69 = arith.constant 1.000000e+00 : f32
      %248 = vector.broadcast %cst_69 : f32 to vector<2x32xf32>
      %249 = arith.addf %248, %247 : vector<2x32xf32>
      %250 = arith.divf %248, %249 : vector<2x32xf32>
      %251 = vector.extract_strided_slice %233 {offsets = [0, 64], sizes = [2, 32], strides = [1, 1]} : vector<2x96xf32> to vector<2x32xf32>
      %252 = vector.extract_strided_slice %234 {offsets = [0, 64], sizes = [2, 32], strides = [1, 1]} : vector<2x96xf32> to vector<2x32xf32>
      %253 = arith.addf %252, %13 : vector<2x32xf32>
      %254 = arith.mulf %242, %253 : vector<2x32xf32>
      %255 = arith.addf %251, %254 : vector<2x32xf32>
      %256 = math.tanh %255 : vector<2x32xf32>
      %cst_70 = arith.constant 1.000000e+00 : f32
      %257 = vector.broadcast %cst_70 : f32 to vector<2x32xf32>
      %258 = arith.subf %257, %250 : vector<2x32xf32>
      %259 = arith.mulf %258, %256 : vector<2x32xf32>
      %260 = arith.mulf %250, %230 : vector<2x32xf32>
      %261 = arith.addf %259, %260 : vector<2x32xf32>
      %c0_71 = arith.constant 0 : index
      %c224 = arith.constant 224 : index
      %262 = vector.load %arg9[%c0_71, %c224] : memref<2x256xf32, #tpu.memory_space<vmem>>, vector<2x32xf32>
      tpu.vector_store %arg9[%c0_71, %c224], %261 {strides = array<i32>} : memref<2x256xf32, #tpu.memory_space<vmem>>, vector<2x32xf32>,
    } else {
    }
    %c0 = arith.constant 0 : index
    %c0_1 = arith.constant 0 : index
    %3 = vector.load %arg9[%c0, %c0_1] : memref<2x256xf32, #tpu.memory_space<vmem>>, vector<2x256xf32>
    %c0_2 = arith.constant 0 : index
    %c0_3 = arith.constant 0 : index
    %4 = vector.load %arg6[%c0_2, %c0_3] : memref<256x128xf32, #tpu.memory_space<vmem>>, vector<256x128xf32>
    %cst = arith.constant dense<0.000000e+00> : vector<2x128xf32>
    %5 = tpu.matmul %3, %4, %cst {dimension_numbers = #tpu.dot_dimension_numbers<[1], [0], [0], [1], [0, 0, 1, 1], [], []>} : vector<2x256xf32>, vector<256x128xf32>, vector<2x128xf32> -> vector<2x128xf32>
    %c0_4 = arith.constant 0 : index
    %c0_5 = arith.constant 0 : index
    %6 = vector.load %arg7[%c0_4, %c0_5] : memref<1x128xf32, #tpu.memory_space<vmem>>, vector<1x128xf32>
    %7 = vector.broadcast %6 : vector<1x128xf32> to vector<2x128xf32>
    %8 = arith.addf %5, %7 : vector<2x128xf32>
    %c0_6 = arith.constant 0 : index
    %c0_7 = arith.constant 0 : index
    %9 = vector.load %arg8[%c0_6, %c0_7] : memref<2x128xf32, #tpu.memory_space<vmem>>, vector<2x128xf32>
    tpu.vector_store %arg8[%c0_6, %c0_7], %8 {strides = array<i32>} : memref<2x128xf32, #tpu.memory_space<vmem>>, vector<2x128xf32>,
    return
  }
  func.func @transform_0(%arg0: i32, %arg1: i32) -> (i32, i32, i32) {
    %c0_i32 = arith.constant 0 : i32
    %c0_i32_0 = arith.constant 0 : i32
    %c0_i32_1 = arith.constant 0 : i32
    return %c0_i32, %arg0, %c0_i32_0 : i32, i32, i32
  }
  func.func @transform_1(%arg0: i32, %arg1: i32) -> (i32, i32) {
    %c0_i32 = arith.constant 0 : i32
    %c0_i32_0 = arith.constant 0 : i32
    return %arg0, %c0_i32 : i32, i32
  }
  func.func @transform_2(%arg0: i32, %arg1: i32) -> (i32, i32) {
    %c0_i32 = arith.constant 0 : i32
    %c0_i32_0 = arith.constant 0 : i32
    %c0_i32_1 = arith.constant 0 : i32
    return %c0_i32, %c0_i32_0 : i32, i32
  }
  func.func @transform_3(%arg0: i32, %arg1: i32) -> (i32, i32) {
    %c0_i32 = arith.constant 0 : i32
    %c0_i32_0 = arith.constant 0 : i32
    %c0_i32_1 = arith.constant 0 : i32
    return %c0_i32, %c0_i32_0 : i32, i32
  }
  func.func @transform_4(%arg0: i32, %arg1: i32) -> (i32, i32) {
    %c0_i32 = arith.constant 0 : i32
    %c0_i32_0 = arith.constant 0 : i32
    return %c0_i32, %arg1 : i32, i32
  }
  func.func @transform_5(%arg0: i32, %arg1: i32) -> (i32, i32) {
    %c0_i32 = arith.constant 0 : i32
    %c0_i32_0 = arith.constant 0 : i32
    return %c0_i32, %arg1 : i32, i32
  }
  func.func @transform_6(%arg0: i32, %arg1: i32) -> (i32, i32) {
    %c0_i32 = arith.constant 0 : i32
    return %arg0, %arg1 : i32, i32
  }
}

</mosaic_0001>

<llo_original>
// kernel: tpu_custom_call.1
$region0: #{tpu_custom_call.1}
  #allocation0 [shape = 'u32[]', space=smem, size = 0x4, offset = 0x4, fixed_abs, tag = 'smem constant byte address 0x4 - core index']
  #allocation1 [shape = 'u32[144,128]{1,0:T(1,128)}', space=vmem, size = 0x12000, scoped, tag = 'internal scratch']
  #allocation2 [shape = 'f32[2,256]{1,0:T(2,128)}', space=vmem, size = 0x800, scoped, tag = 'scratch operand']
  %s0 = inlined_call_operand.hbm [shape: f32[8,2,96], index: 0, kind: input, shape index: {}]
  %s1 = inlined_call_operand.vmem [shape: f32[2,32], index: 1, kind: input, shape index: {}]
  %s2 = inlined_call_operand.hbm [shape: f32[32,96], index: 2, kind: input, shape index: {}]
  %s3 = inlined_call_operand.vmem [shape: f32[1,32], index: 3, kind: input, shape index: {}]
  %s4 = inlined_call_operand.hbm [shape: f32[256,128], index: 4, kind: input, shape index: {}]
  %s5 = inlined_call_operand.vmem [shape: f32[1,128], index: 5, kind: input, shape index: {}]
  %s6 = inlined_call_operand.hbm [shape: f32[2,128], index: 6, kind: output, shape index: {}]
  %s7 = sld [smem:[#allocation0]]
  $region50: #{tpu_custom_call.1} parent=0
    _
  %s9 = ssub.s32 1, %s7
  %s10 = scalar_select 0, %s9, %s7
  $region1: #{tpu_custom_call.1} parent=0
    #allocation3 [shape = 'u8[8192]{0}', space=vmem, size = 0x2000, scoped, tag = 'input window, operand 0, single buffered']
    #allocation4 [shape = 's32[1]{0}', space=sflag, size = 0x4, scoped, tag = 'scoped memory for tpu_custom_call.1']
    #allocation5 [shape = 's32[1]{0}', space=sflag, size = 0x4, scoped, tag = 'scoped memory for tpu_custom_call.1']
    #allocation6 [shape = 'u8[16384]{0}', space=vmem, size = 0x4000, scoped, tag = 'input window, operand 2, single buffered']
    #allocation7 [shape = 's32[1]{0}', space=sflag, size = 0x4, scoped, tag = 'scoped memory for tpu_custom_call.1']
    #allocation8 [shape = 'u8[131072]{0}', space=vmem, size = 0x20000, scoped, tag = 'input window, operand 4, single buffered']
    #allocation9 [shape = 'u8[1024]{0}', space=vmem, size = 0x400, scoped, tag = 'output window, operand 0, single buffered']
    %11 = vsyncpa [#allocation4], 0
    %12 = vsyncpa [#allocation7], 0
    %13 = vsyncpa [#allocation5], 0
    // Predicated region
    $region2: #{tpu_custom_call.1} parent=1 // pred_check
      _
    $region3: #{tpu_custom_call.1} parent=1 // pred_check_branch
      %15 = sbr.rel (0) target = $region5
    $region4: #{tpu_custom_call.1} parent=1 // pred_region
      %s17 = ssub.s32 256, 256
      %18 = vsyncadd [#allocation4], %s17
      %s19 = sshll.u32 [#allocation3], 4
      %s20 = int_to_ptr.vmem [resolvable:$true] %s19
      %25 = dma.hbm_to_vmem [thread:$0]  %s0, 256, %s20, [#allocation4], 32, 32, 2
    $region5: #{tpu_custom_call.1} parent=1 // pred_fallthru
      _
    // Predicated region
    $region6: #{tpu_custom_call.1} parent=1 // pred_check
      _
    $region7: #{tpu_custom_call.1} parent=1 // pred_check_branch
      %27 = sbr.rel (0) target = $region9
    $region8: #{tpu_custom_call.1} parent=1 // pred_region
      _
    $region9: #{tpu_custom_call.1} parent=1 // pred_fallthru
      _
    // Predicated region
    $region10: #{tpu_custom_call.1} parent=1 // pred_check
      _
    $region11: #{tpu_custom_call.1} parent=1 // pred_check_branch
      %29 = sbr.rel (0) target = $region13
    $region12: #{tpu_custom_call.1} parent=1 // pred_region
      %s31 = ssub.s32 512, 512
      %32 = vsyncadd [#allocation7], %s31
      %s33 = sshll.u32 [#allocation6], 4
      %s34 = int_to_ptr.vmem [resolvable:$true] %s33
      %39 = dma.hbm_to_vmem [thread:$0]  %s2, 512, %s34, [#allocation7], 128, 128, 8
    $region13: #{tpu_custom_call.1} parent=1 // pred_fallthru
      _
    // Predicated region
    $region14: #{tpu_custom_call.1} parent=1 // pred_check
      _
    $region15: #{tpu_custom_call.1} parent=1 // pred_check_branch
      %41 = sbr.rel (0) target = $region17
    $region16: #{tpu_custom_call.1} parent=1 // pred_region
      _
    $region17: #{tpu_custom_call.1} parent=1 // pred_fallthru
      _
    // Predicated region
    $region18: #{tpu_custom_call.1} parent=1 // pred_check
      _
    $region19: #{tpu_custom_call.1} parent=1 // pred_check_branch
      %43 = sbr.rel (0) target = $region21
    $region20: #{tpu_custom_call.1} parent=1 // pred_region
      %s45 = ssub.s32 4096, 4096
      %46 = vsyncadd [#allocation7], %s45
      %s47 = sshll.u32 [#allocation8], 4
      %s48 = int_to_ptr.vmem [resolvable:$true] %s47
      %53 = dma.hbm_to_vmem [thread:$0]  %s4, 4096, %s48, [#allocation7], 128, 128, 8
    $region21: #{tpu_custom_call.1} parent=1 // pred_fallthru
      _
    // Predicated region
    $region22: #{tpu_custom_call.1} parent=1 // pred_check
      _
    $region23: #{tpu_custom_call.1} parent=1 // pred_check_branch
      %55 = sbr.rel (0) target = $region25
    $region24: #{tpu_custom_call.1} parent=1 // pred_region
      _
    $region25: #{tpu_custom_call.1} parent=1 // pred_fallthru
      _
    // Predicated region
    $region26: #{tpu_custom_call.1} parent=1 // pred_check
      _
    $region27: #{tpu_custom_call.1} parent=1 // pred_check_branch
      %57 = sbr.rel (0) target = $region29
    $region28: #{tpu_custom_call.1} parent=1 // pred_region
      %58 = dma.done [#allocation4], 256
    $region29: #{tpu_custom_call.1} parent=1 // pred_fallthru
      _
    // Predicated region
    $region30: #{tpu_custom_call.1} parent=1 // pred_check
      _
    $region31: #{tpu_custom_call.1} parent=1 // pred_check_branch
      %60 = sbr.rel (0) target = $region33
    $region32: #{tpu_custom_call.1} parent=1 // pred_region
      %61 = dma.done [#allocation7], 512
    $region33: #{tpu_custom_call.1} parent=1 // pred_fallthru
      _
    // Predicated region
    $region34: #{tpu_custom_call.1} parent=1 // pred_check
      _
    $region35: #{tpu_custom_call.1} parent=1 // pred_check_branch
      %63 = sbr.rel (0) target = $region37
    $region36: #{tpu_custom_call.1} parent=1 // pred_region
      %64 = dma.done [#allocation7], 4096
    $region37: #{tpu_custom_call.1} parent=1 // pred_fallthru
      _
    %p65 = scmp.eq.s32.totalorder 0, 0
    // Predicated region
    $region38: #{tpu_custom_call.1} parent=1 // pred_check
      %p66 = pneg %p65
    $region39: #{tpu_custom_call.1} parent=1 // pred_check_branch
      %68 = sbr.rel (%p66) target = $region41
    $region40: #{tpu_custom_call.1} parent=1 // pred_region
      %v69 = vld [vmem:[#allocation6] sm:$0xff]
      %v70 = vld [vmem:[#allocation6 + $0x8] sm:$0xff]
      %v71 = vld [vmem:[#allocation6 + $0x10] sm:$0xff]
      %v72 = vld [vmem:[#allocation6 + $0x18] sm:$0xff]
      %v73 = vld [vmem:[%s3] sm:$0x1]
      %v75 = vlaneseq
      %v76 = vshrl.u32 %v75, 7
      %v77 = vsub.s32 0, %v76
      %v78 = vrot.slane %v73, %v77
      %v79 = vld [vmem:[%s1] sm:$0x3]
      %v80 = vld [vmem:[#allocation3] sm:$0x3]
      %vm81 = vcmask 261120
      %v83 = vsel %vm81, %v79, 0
      %85 = vmatprep.subr.mxu0 0.0
      %86 = vmatpush1.msra.mxu0 %v69
      %87 = vmatprep.subr.mxu0 0.0
      %88 = vmatpush1.msra.mxu0 %v70
      %89 = vmatprep.subr.mxu0 0.0
      %90 = vmatpush1.msra.mxu0 %v71
      %91 = vmatprep.subr.mxu0 0.0
      %92 = vmatpush1.msra.mxu0 %v72
      %93 = vmatprep.subr.mxu0 0.0
      %94 = vmatpush1.msra.mxu0 0.0
      %95 = vmatprep.subr.mxu0 0.0
      %96 = vmatpush1.msra.mxu0 0.0
      %97 = vmatprep.subr.mxu0 0.0
      %98 = vmatpush1.msra.mxu0 0.0
      %99 = vmatprep.subr.mxu0 0.0
      %100 = vmatpush1.msra.mxu0 0.0
      %101 = vmatprep.subr.mxu0 0.0
      %102 = vmatpush1.msra.mxu0 0.0
      %103 = vmatprep.subr.mxu0 0.0
      %104 = vmatpush1.msra.mxu0 0.0
      %105 = vmatprep.subr.mxu0 0.0
      %106 = vmatpush1.msra.mxu0 0.0
      %107 = vmatprep.subr.mxu0 0.0
      %108 = vmatpush1.msra.mxu0 0.0
      %109 = vmatprep.subr.mxu0 0.0
      %110 = vmatpush1.msra.mxu0 0.0
      %111 = vmatprep.subr.mxu0 0.0
      %112 = vmatpush1.msra.mxu0 0.0
      %113 = vmatprep.subr.mxu0 0.0
      %114 = vmatpush1.msra.mxu0 0.0
      %115 = vmatprep.subr.mxu0 0.0
      %116 = vmatpush1.msra.mxu0 0.0
      %117 = vmatprep.subr.mxu0 0.0
      %118 = vmatpush1.msra.mxu0 0.0
      %119 = vmatprep.subr.mxu0 0.0
      %120 = vmatpush1.msra.mxu0 0.0
      %121 = vmatprep.subr.mxu0 0.0
      %122 = vmatpush1.msra.mxu0 0.0
      %123 = vmatprep.subr.mxu0 0.0
      %124 = vmatpush1.msra.mxu0 0.0
      %125 = vmatprep.subr.mxu0 0.0
      %126 = vmatpush1.msra.mxu0 0.0
      %127 = vmatprep.subr.mxu0 0.0
      %128 = vmatpush1.msra.mxu0 0.0
      %129 = vmatprep.subr.mxu0 0.0
      %130 = vmatpush1.msra.mxu0 0.0
      %131 = vmatprep.subr.mxu0 0.0
      %132 = vmatpush1.msra.mxu0 0.0
      %133 = vmatprep.subr.mxu0 0.0
      %134 = vmatpush1.msra.mxu0 0.0
      %135 = vmatprep.subr.mxu0 0.0
      %136 = vmatpush1.msra.mxu0 0.0
      %137 = vmatprep.subr.mxu0 0.0
      %138 = vmatpush1.msra.mxu0 0.0
      %139 = vmatprep.subr.mxu0 0.0
      %140 = vmatpush1.msra.mxu0 0.0
      %141 = vmatprep.subr.mxu0 0.0
      %142 = vmatpush1.msra.mxu0 0.0
      %143 = vmatprep.subr.mxu0 0.0
      %144 = vmatpush1.msra.mxu0 0.0
      %145 = vmatprep.subr.mxu0 0.0
      %146 = vmatpush1.msra.mxu0 0.0
      %147 = vmatprep.subr.mxu0 0.0
      %148 = vmatpush1.msra.mxu0 0.0
      %149 = vmatprep.mubr.f32.mxu0 0.0
      %150 = vmatmul.mubr.f32.gmra.mrb[0].mxu0 %v83
      %v151 = vpop.f32.mrb[0].mxu0
      %v152 = vadd.f32 0.0, %v151
      %v153 = vpop.f32.mrb[0].mxu0
      %154 = vdwg.mxu0
      %v155 = vadd.f32 %v80, %v152
      %v156 = vxor.u32 %v155, 2147483648
      %v157 = vmul.f32 %v156, 1.442695
      %v158 = vpow.pop %v157
      %v159 = vadd.f32 %v158, 1.0
      %v160 = vrcp.pop %v159
      %v161 = vmul.f32 1.0, %v160
      %162 = vrot.lane.b32.xlu0 %v78, 64
      %v163 = vpop.permute.xlu0 %162
      %v165 = vadd.f32 %v152, %v163
      %167 = vrot.lane.b32.xlu0 %v165, 64
      %v168 = vpop.permute.xlu0 %167
      %v170 = vmul.f32 %v161, %v168
      %172 = vrot.lane.b32.xlu0 %v170, 64
      %v173 = vpop.permute.xlu0 %172
      %v175 = vadd.f32 %v80, %v173
      %v176 = vtanh.pop %v175
      %v177 = vsub.f32 1.0, %v161
      %179 = vrot.lane.b32.xlu0 %v176, 96
      %v180 = vpop.permute.xlu0 %179
      %v182 = vmul.f32 %v177, %v180
      %183 = vrot.lane.b32.xlu0 %v79, 32
      %v184 = vpop.permute.xlu0 %183
      %v186 = vmul.f32 %v161, %v184
      %v187 = vadd.f32 %v182, %v186
      %v190 = vunpack.c.l.s4 1983009808
      %v191 = vunpack.c.0.s8 %v190
      %v192 = vlaneseq
      %v193 = vshrl.u32 %v192, 7
      %v194 = vsub.s32 %v191, %v193
      %v195 = vrot.slane %v187, %v194
      %196 = vrot.lane.b32.xlu0 %v195, 96
      %v197 = vpop.permute.xlu0 %196
      %vm199 = vcmask 254976
      %200 = vst.msk [vmem:[#allocation2] sm:$0x3] %vm199, %v197
      %s201 = scalar_lea.vmem [#allocation3], 2
      %v202 = vld [vmem:[%s201] sm:$0x3]
      %203 = vrot.lane.b32.xlu0 %v187, 96
      %v204 = vpop.permute.xlu0 %203
      %v205 = vsel %vm81, %v204, 0
      %207 = vmatprep.subr.mxu0 0.0
      %208 = vmatpush1.msra.mxu0 %v69
      %209 = vmatprep.subr.mxu0 0.0
      %210 = vmatpush1.msra.mxu0 %v70
      %211 = vmatprep.subr.mxu0 0.0
      %212 = vmatpush1.msra.mxu0 %v71
      %213 = vmatprep.subr.mxu0 0.0
      %214 = vmatpush1.msra.mxu0 %v72
      %215 = vmatprep.subr.mxu0 0.0
      %216 = vmatpush1.msra.mxu0 0.0
      %217 = vmatprep.subr.mxu0 0.0
      %218 = vmatpush1.msra.mxu0 0.0
      %219 = vmatprep.subr.mxu0 0.0
      %220 = vmatpush1.msra.mxu0 0.0
      %221 = vmatprep.subr.mxu0 0.0
      %222 = vmatpush1.msra.mxu0 0.0
      %223 = vmatprep.subr.mxu0 0.0
      %224 = vmatpush1.msra.mxu0 0.0
      %225 = vmatprep.subr.mxu0 0.0
      %226 = vmatpush1.msra.mxu0 0.0
      %227 = vmatprep.subr.mxu0 0.0
      %228 = vmatpush1.msra.mxu0 0.0
      %229 = vmatprep.subr.mxu0 0.0
      %230 = vmatpush1.msra.mxu0 0.0
      %231 = vmatprep.subr.mxu0 0.0
      %232 = vmatpush1.msra.mxu0 0.0
      %233 = vmatprep.subr.mxu0 0.0
      %234 = vmatpush1.msra.mxu0 0.0
      %235 = vmatprep.subr.mxu0 0.0
      %236 = vmatpush1.msra.mxu0 0.0
      %237 = vmatprep.subr.mxu0 0.0
      %238 = vmatpush1.msra.mxu0 0.0
      %239 = vmatprep.subr.mxu0 0.0
      %240 = vmatpush1.msra.mxu0 0.0
      %241 = vmatprep.subr.mxu0 0.0
      %242 = vmatpush1.msra.mxu0 0.0
      %243 = vmatprep.subr.mxu0 0.0
      %244 = vmatpush1.msra.mxu0 0.0
      %245 = vmatprep.subr.mxu0 0.0
      %246 = vmatpush1.msra.mxu0 0.0
      %247 = vmatprep.subr.mxu0 0.0
      %248 = vmatpush1.msra.mxu0 0.0
      %249 = vmatprep.subr.mxu0 0.0
      %250 = vmatpush1.msra.mxu0 0.0
      %251 = vmatprep.subr.mxu0 0.0
      %252 = vmatpush1.msra.mxu0 0.0
      %253 = vmatprep.subr.mxu0 0.0
      %254 = vmatpush1.msra.mxu0 0.0
      %255 = vmatprep.subr.mxu0 0.0
      %256 = vmatpush1.msra.mxu0 0.0
      %257 = vmatprep.subr.mxu0 0.0
      %258 = vmatpush1.msra.mxu0 0.0
      %259 = vmatprep.subr.mxu0 0.0
      %260 = vmatpush1.msra.mxu0 0.0
      %261 = vmatprep.subr.mxu0 0.0
      %262 = vmatpush1.msra.mxu0 0.0
      %263 = vmatprep.subr.mxu0 0.0
      %264 = vmatpush1.msra.mxu0 0.0
      %265 = vmatprep.subr.mxu0 0.0
      %266 = vmatpush1.msra.mxu0 0.0
      %267 = vmatprep.subr.mxu0 0.0
      %268 = vmatpush1.msra.mxu0 0.0
      %269 = vmatprep.subr.mxu0 0.0
      %270 = vmatpush1.msra.mxu0 0.0
      %271 = vmatprep.mubr.f32.mxu0 0.0
      %272 = vmatmul.mubr.f32.gmra.mrb[0].mxu0 %v205
      %v273 = vpop.f32.mrb[0].mxu0
      %v274 = vadd.f32 0.0, %v273
      %v275 = vpop.f32.mrb[0].mxu0
      %276 = vdwg.mxu0
      %v277 = vadd.f32 %v202, %v274
      %v278 = vxor.u32 %v277, 2147483648
      %v279 = vmul.f32 %v278, 1.442695
      %v280 = vpow.pop %v279
      %v281 = vadd.f32 %v280, 1.0
      %v282 = vrcp.pop %v281
      %v283 = vmul.f32 1.0, %v282
      %v284 = vadd.f32 %v274, %v163
      %286 = vrot.lane.b32.xlu0 %v284, 64
      %v287 = vpop.permute.xlu0 %286
      %v289 = vmul.f32 %v283, %v287
      %291 = vrot.lane.b32.xlu0 %v289, 64
      %v292 = vpop.permute.xlu0 %291
      %v294 = vadd.f32 %v202, %v292
      %v295 = vtanh.pop %v294
      %v296 = vsub.f32 1.0, %v283
      %298 = vrot.lane.b32.xlu0 %v295, 96
      %v299 = vpop.permute.xlu0 %298
      %v301 = vmul.f32 %v296, %v299
      %v302 = vmul.f32 %v283, %v187
      %v303 = vadd.f32 %v301, %v302
      %vm304 = vcmask 517376
      %305 = vst.msk [vmem:[#allocation2] sm:$0x3] %vm304, %v303
      %s306 = scalar_lea.vmem [#allocation3], 4
      %v307 = vld [vmem:[%s306] sm:$0x3]
      %309 = vrot.lane.b32.xlu0 %v303, 96
      %v310 = vpop.permute.xlu0 %309
      %v311 = vsel %vm81, %v310, 0
      %313 = vmatprep.subr.mxu0 0.0
      %314 = vmatpush1.msra.mxu0 %v69
      %315 = vmatprep.subr.mxu0 0.0
      %316 = vmatpush1.msra.mxu0 %v70
      %317 = vmatprep.subr.mxu0 0.0
      %318 = vmatpush1.msra.mxu0 %v71
      %319 = vmatprep.subr.mxu0 0.0
      %320 = vmatpush1.msra.mxu0 %v72
      %321 = vmatprep.subr.mxu0 0.0
      %322 = vmatpush1.msra.mxu0 0.0
      %323 = vmatprep.subr.mxu0 0.0
      %324 = vmatpush1.msra.mxu0 0.0
      %325 = vmatprep.subr.mxu0 0.0
      %326 = vmatpush1.msra.mxu0 0.0
      %327 = vmatprep.subr.mxu0 0.0
      %328 = vmatpush1.msra.mxu0 0.0
      %329 = vmatprep.subr.mxu0 0.0
      %330 = vmatpush1.msra.mxu0 0.0
      %331 = vmatprep.subr.mxu0 0.0
      %332 = vmatpush1.msra.mxu0 0.0
      %333 = vmatprep.subr.mxu0 0.0
      %334 = vmatpush1.msra.mxu0 0.0
      %335 = vmatprep.subr.mxu0 0.0
      %336 = vmatpush1.msra.mxu0 0.0
      %337 = vmatprep.subr.mxu0 0.0
      %338 = vmatpush1.msra.mxu0 0.0
      %339 = vmatprep.subr.mxu0 0.0
      %340 = vmatpush1.msra.mxu0 0.0
      %341 = vmatprep.subr.mxu0 0.0
      %342 = vmatpush1.msra.mxu0 0.0
      %343 = vmatprep.subr.mxu0 0.0
      %344 = vmatpush1.msra.mxu0 0.0
      %345 = vmatprep.subr.mxu0 0.0
      %346 = vmatpush1.msra.mxu0 0.0
      %347 = vmatprep.subr.mxu0 0.0
      %348 = vmatpush1.msra.mxu0 0.0
      %349 = vmatprep.subr.mxu0 0.0
      %350 = vmatpush1.msra.mxu0 0.0
      %351 = vmatprep.subr.mxu0 0.0
      %352 = vmatpush1.msra.mxu0 0.0
      %353 = vmatprep.subr.mxu0 0.0
      %354 = vmatpush1.msra.mxu0 0.0
      %355 = vmatprep.subr.mxu0 0.0
      %356 = vmatpush1.msra.mxu0 0.0
      %357 = vmatprep.subr.mxu0 0.0
      %358 = vmatpush1.msra.mxu0 0.0
      %359 = vmatprep.subr.mxu0 0.0
      %360 = vmatpush1.msra.mxu0 0.0
      %361 = vmatprep.subr.mxu0 0.0
      %362 = vmatpush1.msra.mxu0 0.0
      %363 = vmatprep.subr.mxu0 0.0
      %364 = vmatpush1.msra.mxu0 0.0
      %365 = vmatprep.subr.mxu0 0.0
      %366 = vmatpush1.msra.mxu0 0.0
      %367 = vmatprep.subr.mxu0 0.0
      %368 = vmatpush1.msra.mxu0 0.0
      %369 = vmatprep.subr.mxu0 0.0
      %370 = vmatpush1.msra.mxu0 0.0
      %371 = vmatprep.subr.mxu0 0.0
      %372 = vmatpush1.msra.mxu0 0.0
      %373 = vmatprep.subr.mxu0 0.0
      %374 = vmatpush1.msra.mxu0 0.0
      %375 = vmatprep.subr.mxu0 0.0
      %376 = vmatpush1.msra.mxu0 0.0
      %377 = vmatprep.mubr.f32.mxu0 0.0
      %378 = vmatmul.mubr.f32.gmra.mrb[0].mxu0 %v311
      %v379 = vpop.f32.mrb[0].mxu0
      %v380 = vadd.f32 0.0, %v379
      %v381 = vpop.f32.mrb[0].mxu0
      %382 = vdwg.mxu0
      %v383 = vadd.f32 %v307, %v380
      %v384 = vxor.u32 %v383, 2147483648
      %v385 = vmul.f32 %v384, 1.442695
      %v386 = vpow.pop %v385
      %v387 = vadd.f32 %v386, 1.0
      %v388 = vrcp.pop %v387
      %v389 = vmul.f32 1.0, %v388
      %v390 = vadd.f32 %v380, %v163
      %392 = vrot.lane.b32.xlu0 %v390, 64
      %v393 = vpop.permute.xlu0 %392
      %v395 = vmul.f32 %v389, %v393
      %397 = vrot.lane.b32.xlu0 %v395, 64
      %v398 = vpop.permute.xlu0 %397
      %v400 = vadd.f32 %v307, %v398
      %v401 = vtanh.pop %v400
      %v402 = vsub.f32 1.0, %v389
      %404 = vrot.lane.b32.xlu0 %v401, 96
      %v405 = vpop.permute.xlu0 %404
      %v407 = vmul.f32 %v402, %v405
      %v408 = vmul.f32 %v389, %v303
      %v409 = vadd.f32 %v407, %v408
      %v412 = vunpack.c.l.s4 1983009808
      %v413 = vunpack.c.0.s8 %v412
      %v414 = vlaneseq
      %v415 = vshrl.u32 %v414, 7
      %v416 = vsub.s32 %v413, %v415
      %v417 = vrot.slane %v409, %v416
      %418 = vrot.lane.b32.xlu0 %v417, 32
      %v419 = vpop.permute.xlu0 %418
      %vm421 = vcmask 779776
      %422 = vst.msk [vmem:[#allocation2] sm:$0x3] %vm421, %v419
      %s423 = scalar_lea.vmem [#allocation3], 6
      %v424 = vld [vmem:[%s423] sm:$0x3]
      %425 = vrot.lane.b32.xlu0 %v409, 96
      %v426 = vpop.permute.xlu0 %425
      %v427 = vsel %vm81, %v426, 0
      %429 = vmatprep.subr.mxu0 0.0
      %430 = vmatpush1.msra.mxu0 %v69
      %431 = vmatprep.subr.mxu0 0.0
      %432 = vmatpush1.msra.mxu0 %v70
      %433 = vmatprep.subr.mxu0 0.0
      %434 = vmatpush1.msra.mxu0 %v71
      %435 = vmatprep.subr.mxu0 0.0
      %436 = vmatpush1.msra.mxu0 %v72
      %437 = vmatprep.subr.mxu0 0.0
      %438 = vmatpush1.msra.mxu0 0.0
      %439 = vmatprep.subr.mxu0 0.0
      %440 = vmatpush1.msra.mxu0 0.0
      %441 = vmatprep.subr.mxu0 0.0
      %442 = vmatpush1.msra.mxu0 0.0
      %443 = vmatprep.subr.mxu0 0.0
      %444 = vmatpush1.msra.mxu0 0.0
      %445 = vmatprep.subr.mxu0 0.0
      %446 = vmatpush1.msra.mxu0 0.0
      %447 = vmatprep.subr.mxu0 0.0
      %448 = vmatpush1.msra.mxu0 0.0
      %449 = vmatprep.subr.mxu0 0.0
      %450 = vmatpush1.msra.mxu0 0.0
      %451 = vmatprep.subr.mxu0 0.0
      %452 = vmatpush1.msra.mxu0 0.0
      %453 = vmatprep.subr.mxu0 0.0
      %454 = vmatpush1.msra.mxu0 0.0
      %455 = vmatprep.subr.mxu0 0.0
      %456 = vmatpush1.msra.mxu0 0.0
      %457 = vmatprep.subr.mxu0 0.0
      %458 = vmatpush1.msra.mxu0 0.0
      %459 = vmatprep.subr.mxu0 0.0
      %460 = vmatpush1.msra.mxu0 0.0
      %461 = vmatprep.subr.mxu0 0.0
      %462 = vmatpush1.msra.mxu0 0.0
      %463 = vmatprep.subr.mxu0 0.0
      %464 = vmatpush1.msra.mxu0 0.0
      %465 = vmatprep.subr.mxu0 0.0
      %466 = vmatpush1.msra.mxu0 0.0
      %467 = vmatprep.subr.mxu0 0.0
      %468 = vmatpush1.msra.mxu0 0.0
      %469 = vmatprep.subr.mxu0 0.0
      %470 = vmatpush1.msra.mxu0 0.0
      %471 = vmatprep.subr.mxu0 0.0
      %472 = vmatpush1.msra.mxu0 0.0
      %473 = vmatprep.subr.mxu0 0.0
      %474 = vmatpush1.msra.mxu0 0.0
      %475 = vmatprep.subr.mxu0 0.0
      %476 = vmatpush1.msra.mxu0 0.0
      %477 = vmatprep.subr.mxu0 0.0
      %478 = vmatpush1.msra.mxu0 0.0
      %479 = vmatprep.subr.mxu0 0.0
      %480 = vmatpush1.msra.mxu0 0.0
      %481 = vmatprep.subr.mxu0 0.0
      %482 = vmatpush1.msra.mxu0 0.0
      %483 = vmatprep.subr.mxu0 0.0
      %484 = vmatpush1.msra.mxu0 0.0
      %485 = vmatprep.subr.mxu0 0.0
      %486 = vmatpush1.msra.mxu0 0.0
      %487 = vmatprep.subr.mxu0 0.0
      %488 = vmatpush1.msra.mxu0 0.0
      %489 = vmatprep.subr.mxu0 0.0
      %490 = vmatpush1.msra.mxu0 0.0
      %491 = vmatprep.subr.mxu0 0.0
      %492 = vmatpush1.msra.mxu0 0.0
      %493 = vmatprep.mubr.f32.mxu0 0.0
      %494 = vmatmul.mubr.f32.gmra.mrb[0].mxu0 %v427
      %v495 = vpop.f32.mrb[0].mxu0
      %v496 = vadd.f32 0.0, %v495
      %v497 = vpop.f32.mrb[0].mxu0
      %498 = vdwg.mxu0
      %v499 = vadd.f32 %v424, %v496
      %v500 = vxor.u32 %v499, 2147483648
      %v501 = vmul.f32 %v500, 1.442695
      %v502 = vpow.pop %v501
      %v503 = vadd.f32 %v502, 1.0
      %v504 = vrcp.pop %v503
      %v505 = vmul.f32 1.0, %v504
      %v506 = vadd.f32 %v496, %v163
      %508 = vrot.lane.b32.xlu0 %v506, 64
      %v509 = vpop.permute.xlu0 %508
      %v511 = vmul.f32 %v505, %v509
      %513 = vrot.lane.b32.xlu0 %v511, 64
      %v514 = vpop.permute.xlu0 %513
      %v516 = vadd.f32 %v424, %v514
      %v517 = vtanh.pop %v516
      %v518 = vsub.f32 1.0, %v505
      %520 = vrot.lane.b32.xlu0 %v517, 96
      %v521 = vpop.permute.xlu0 %520
      %v523 = vmul.f32 %v518, %v521
      %v524 = vmul.f32 %v505, %v409
      %v525 = vadd.f32 %v523, %v524
      %v528 = vunpack.c.l.s4 1983009808
      %v529 = vunpack.c.0.s8 %v528
      %v530 = vlaneseq
      %v531 = vshrl.u32 %v530, 7
      %v532 = vsub.s32 %v529, %v531
      %v533 = vrot.slane %v525, %v532
      %534 = vrot.lane.b32.xlu0 %v533, 64
      %v535 = vpop.permute.xlu0 %534
      %vm537 = vcmask 1042176
      %538 = vst.msk [vmem:[#allocation2] sm:$0x3] %vm537, %v535
      %s539 = scalar_lea.vmem [#allocation3], 8
      %v540 = vld [vmem:[%s539] sm:$0x3]
      %541 = vrot.lane.b32.xlu0 %v525, 96
      %v542 = vpop.permute.xlu0 %541
      %v543 = vsel %vm81, %v542, 0
      %545 = vmatprep.subr.mxu0 0.0
      %546 = vmatpush1.msra.mxu0 %v69
      %547 = vmatprep.subr.mxu0 0.0
      %548 = vmatpush1.msra.mxu0 %v70
      %549 = vmatprep.subr.mxu0 0.0
      %550 = vmatpush1.msra.mxu0 %v71
      %551 = vmatprep.subr.mxu0 0.0
      %552 = vmatpush1.msra.mxu0 %v72
      %553 = vmatprep.subr.mxu0 0.0
      %554 = vmatpush1.msra.mxu0 0.0
      %555 = vmatprep.subr.mxu0 0.0
      %556 = vmatpush1.msra.mxu0 0.0
      %557 = vmatprep.subr.mxu0 0.0
      %558 = vmatpush1.msra.mxu0 0.0
      %559 = vmatprep.subr.mxu0 0.0
      %560 = vmatpush1.msra.mxu0 0.0
      %561 = vmatprep.subr.mxu0 0.0
      %562 = vmatpush1.msra.mxu0 0.0
      %563 = vmatprep.subr.mxu0 0.0
      %564 = vmatpush1.msra.mxu0 0.0
      %565 = vmatprep.subr.mxu0 0.0
      %566 = vmatpush1.msra.mxu0 0.0
      %567 = vmatprep.subr.mxu0 0.0
      %568 = vmatpush1.msra.mxu0 0.0
      %569 = vmatprep.subr.mxu0 0.0
      %570 = vmatpush1.msra.mxu0 0.0
      %571 = vmatprep.subr.mxu0 0.0
      %572 = vmatpush1.msra.mxu0 0.0
      %573 = vmatprep.subr.mxu0 0.0
      %574 = vmatpush1.msra.mxu0 0.0
      %575 = vmatprep.subr.mxu0 0.0
      %576 = vmatpush1.msra.mxu0 0.0
      %577 = vmatprep.subr.mxu0 0.0
      %578 = vmatpush1.msra.mxu0 0.0
      %579 = vmatprep.subr.mxu0 0.0
      %580 = vmatpush1.msra.mxu0 0.0
      %581 = vmatprep.subr.mxu0 0.0
      %582 = vmatpush1.msra.mxu0 0.0
      %583 = vmatprep.subr.mxu0 0.0
      %584 = vmatpush1.msra.mxu0 0.0
      %585 = vmatprep.subr.mxu0 0.0
      %586 = vmatpush1.msra.mxu0 0.0
      %587 = vmatprep.subr.mxu0 0.0
      %588 = vmatpush1.msra.mxu0 0.0
      %589 = vmatprep.subr.mxu0 0.0
      %590 = vmatpush1.msra.mxu0 0.0
      %591 = vmatprep.subr.mxu0 0.0
      %592 = vmatpush1.msra.mxu0 0.0
      %593 = vmatprep.subr.mxu0 0.0
      %594 = vmatpush1.msra.mxu0 0.0
      %595 = vmatprep.subr.mxu0 0.0
      %596 = vmatpush1.msra.mxu0 0.0
      %597 = vmatprep.subr.mxu0 0.0
      %598 = vmatpush1.msra.mxu0 0.0
      %599 = vmatprep.subr.mxu0 0.0
      %600 = vmatpush1.msra.mxu0 0.0
      %601 = vmatprep.subr.mxu0 0.0
      %602 = vmatpush1.msra.mxu0 0.0
      %603 = vmatprep.subr.mxu0 0.0
      %604 = vmatpush1.msra.mxu0 0.0
      %605 = vmatprep.subr.mxu0 0.0
      %606 = vmatpush1.msra.mxu0 0.0
      %607 = vmatprep.subr.mxu0 0.0
      %608 = vmatpush1.msra.mxu0 0.0
      %609 = vmatprep.mubr.f32.mxu0 0.0
      %610 = vmatmul.mubr.f32.gmra.mrb[0].mxu0 %v543
      %v611 = vpop.f32.mrb[0].mxu0
      %v612 = vadd.f32 0.0, %v611
      %v613 = vpop.f32.mrb[0].mxu0
      %614 = vdwg.mxu0
      %v615 = vadd.f32 %v540, %v612
      %v616 = vxor.u32 %v615, 2147483648
      %v617 = vmul.f32 %v616, 1.442695
      %v618 = vpow.pop %v617
      %v619 = vadd.f32 %v618, 1.0
      %v620 = vrcp.pop %v619
      %v621 = vmul.f32 1.0, %v620
      %v622 = vadd.f32 %v612, %v163
      %624 = vrot.lane.b32.xlu0 %v622, 64
      %v625 = vpop.permute.xlu0 %624
      %v627 = vmul.f32 %v621, %v625
      %629 = vrot.lane.b32.xlu0 %v627, 64
      %v630 = vpop.permute.xlu0 %629
      %v632 = vadd.f32 %v540, %v630
      %v633 = vtanh.pop %v632
      %v634 = vsub.f32 1.0, %v621
      %636 = vrot.lane.b32.xlu0 %v633, 96
      %v637 = vpop.permute.xlu0 %636
      %v639 = vmul.f32 %v634, %v637
      %v640 = vmul.f32 %v621, %v525
      %v641 = vadd.f32 %v639, %v640
      %v644 = vunpack.c.l.s4 1983009808
      %v645 = vunpack.c.0.s8 %v644
      %v646 = vlaneseq
      %v647 = vshrl.u32 %v646, 7
      %v648 = vsub.s32 %v645, %v647
      %v649 = vrot.slane %v641, %v648
      %650 = vrot.lane.b32.xlu0 %v649, 96
      %v651 = vpop.permute.xlu0 %650
      %653 = vst.msk [vmem:[#allocation2 + $0x2] sm:$0x3] %vm199, %v651
      %s654 = scalar_lea.vmem [#allocation3], 10
      %v655 = vld [vmem:[%s654] sm:$0x3]
      %656 = vrot.lane.b32.xlu0 %v641, 96
      %v657 = vpop.permute.xlu0 %656
      %v658 = vsel %vm81, %v657, 0
      %660 = vmatprep.subr.mxu0 0.0
      %661 = vmatpush1.msra.mxu0 %v69
      %662 = vmatprep.subr.mxu0 0.0
      %663 = vmatpush1.msra.mxu0 %v70
      %664 = vmatprep.subr.mxu0 0.0
      %665 = vmatpush1.msra.mxu0 %v71
      %666 = vmatprep.subr.mxu0 0.0
      %667 = vmatpush1.msra.mxu0 %v72
      %668 = vmatprep.subr.mxu0 0.0
      %669 = vmatpush1.msra.mxu0 0.0
      %670 = vmatprep.subr.mxu0 0.0
      %671 = vmatpush1.msra.mxu0 0.0
      %672 = vmatprep.subr.mxu0 0.0
      %673 = vmatpush1.msra.mxu0 0.0
      %674 = vmatprep.subr.mxu0 0.0
      %675 = vmatpush1.msra.mxu0 0.0
      %676 = vmatprep.subr.mxu0 0.0
      %677 = vmatpush1.msra.mxu0 0.0
      %678 = vmatprep.subr.mxu0 0.0
      %679 = vmatpush1.msra.mxu0 0.0
      %680 = vmatprep.subr.mxu0 0.0
      %681 = vmatpush1.msra.mxu0 0.0
      %682 = vmatprep.subr.mxu0 0.0
      %683 = vmatpush1.msra.mxu0 0.0
      %684 = vmatprep.subr.mxu0 0.0
      %685 = vmatpush1.msra.mxu0 0.0
      %686 = vmatprep.subr.mxu0 0.0
      %687 = vmatpush1.msra.mxu0 0.0
      %688 = vmatprep.subr.mxu0 0.0
      %689 = vmatpush1.msra.mxu0 0.0
      %690 = vmatprep.subr.mxu0 0.0
      %691 = vmatpush1.msra.mxu0 0.0
      %692 = vmatprep.subr.mxu0 0.0
      %693 = vmatpush1.msra.mxu0 0.0
      %694 = vmatprep.subr.mxu0 0.0
      %695 = vmatpush1.msra.mxu0 0.0
      %696 = vmatprep.subr.mxu0 0.0
      %697 = vmatpush1.msra.mxu0 0.0
      %698 = vmatprep.subr.mxu0 0.0
      %699 = vmatpush1.msra.mxu0 0.0
      %700 = vmatprep.subr.mxu0 0.0
      %701 = vmatpush1.msra.mxu0 0.0
      %702 = vmatprep.subr.mxu0 0.0
      %703 = vmatpush1.msra.mxu0 0.0
      %704 = vmatprep.subr.mxu0 0.0
      %705 = vmatpush1.msra.mxu0 0.0
      %706 = vmatprep.subr.mxu0 0.0
      %707 = vmatpush1.msra.mxu0 0.0
      %708 = vmatprep.subr.mxu0 0.0
      %709 = vmatpush1.msra.mxu0 0.0
      %710 = vmatprep.subr.mxu0 0.0
      %711 = vmatpush1.msra.mxu0 0.0
      %712 = vmatprep.subr.mxu0 0.0
      %713 = vmatpush1.msra.mxu0 0.0
      %714 = vmatprep.subr.mxu0 0.0
      %715 = vmatpush1.msra.mxu0 0.0
      %716 = vmatprep.subr.mxu0 0.0
      %717 = vmatpush1.msra.mxu0 0.0
      %718 = vmatprep.subr.mxu0 0.0
      %719 = vmatpush1.msra.mxu0 0.0
      %720 = vmatprep.subr.mxu0 0.0
      %721 = vmatpush1.msra.mxu0 0.0
      %722 = vmatprep.subr.mxu0 0.0
      %723 = vmatpush1.msra.mxu0 0.0
      %724 = vmatprep.mubr.f32.mxu0 0.0
      %725 = vmatmul.mubr.f32.gmra.mrb[0].mxu0 %v658
      %v726 = vpop.f32.mrb[0].mxu0
      %v727 = vadd.f32 0.0, %v726
      %v728 = vpop.f32.mrb[0].mxu0
      %729 = vdwg.mxu0
      %v730 = vadd.f32 %v655, %v727
      %v731 = vxor.u32 %v730, 2147483648
      %v732 = vmul.f32 %v731, 1.442695
      %v733 = vpow.pop %v732
      %v734 = vadd.f32 %v733, 1.0
      %v735 = vrcp.pop %v734
      %v736 = vmul.f32 1.0, %v735
      %v737 = vadd.f32 %v727, %v163
      %739 = vrot.lane.b32.xlu0 %v737, 64
      %v740 = vpop.permute.xlu0 %739
      %v742 = vmul.f32 %v736, %v740
      %744 = vrot.lane.b32.xlu0 %v742, 64
      %v745 = vpop.permute.xlu0 %744
      %v747 = vadd.f32 %v655, %v745
      %v748 = vtanh.pop %v747
      %v749 = vsub.f32 1.0, %v736
      %751 = vrot.lane.b32.xlu0 %v748, 96
      %v752 = vpop.permute.xlu0 %751
      %v754 = vmul.f32 %v749, %v752
      %v755 = vmul.f32 %v736, %v641
      %v756 = vadd.f32 %v754, %v755
      %757 = vst.msk [vmem:[#allocation2 + $0x2] sm:$0x3] %vm304, %v756
      %s758 = scalar_lea.vmem [#allocation3], 12
      %v759 = vld [vmem:[%s758] sm:$0x3]
      %761 = vrot.lane.b32.xlu0 %v756, 96
      %v762 = vpop.permute.xlu0 %761
      %v763 = vsel %vm81, %v762, 0
      %765 = vmatprep.subr.mxu0 0.0
      %766 = vmatpush1.msra.mxu0 %v69
      %767 = vmatprep.subr.mxu0 0.0
      %768 = vmatpush1.msra.mxu0 %v70
      %769 = vmatprep.subr.mxu0 0.0
      %770 = vmatpush1.msra.mxu0 %v71
      %771 = vmatprep.subr.mxu0 0.0
      %772 = vmatpush1.msra.mxu0 %v72
      %773 = vmatprep.subr.mxu0 0.0
      %774 = vmatpush1.msra.mxu0 0.0
      %775 = vmatprep.subr.mxu0 0.0
      %776 = vmatpush1.msra.mxu0 0.0
      %777 = vmatprep.subr.mxu0 0.0
      %778 = vmatpush1.msra.mxu0 0.0
      %779 = vmatprep.subr.mxu0 0.0
      %780 = vmatpush1.msra.mxu0 0.0
      %781 = vmatprep.subr.mxu0 0.0
      %782 = vmatpush1.msra.mxu0 0.0
      %783 = vmatprep.subr.mxu0 0.0
      %784 = vmatpush1.msra.mxu0 0.0
      %785 = vmatprep.subr.mxu0 0.0
      %786 = vmatpush1.msra.mxu0 0.0
      %787 = vmatprep.subr.mxu0 0.0
      %788 = vmatpush1.msra.mxu0 0.0
      %789 = vmatprep.subr.mxu0 0.0
      %790 = vmatpush1.msra.mxu0 0.0
      %791 = vmatprep.subr.mxu0 0.0
      %792 = vmatpush1.msra.mxu0 0.0
      %793 = vmatprep.subr.mxu0 0.0
      %794 = vmatpush1.msra.mxu0 0.0
      %795 = vmatprep.subr.mxu0 0.0
      %796 = vmatpush1.msra.mxu0 0.0
      %797 = vmatprep.subr.mxu0 0.0
      %798 = vmatpush1.msra.mxu0 0.0
      %799 = vmatprep.subr.mxu0 0.0
      %800 = vmatpush1.msra.mxu0 0.0
      %801 = vmatprep.subr.mxu0 0.0
      %802 = vmatpush1.msra.mxu0 0.0
      %803 = vmatprep.subr.mxu0 0.0
      %804 = vmatpush1.msra.mxu0 0.0
      %805 = vmatprep.subr.mxu0 0.0
      %806 = vmatpush1.msra.mxu0 0.0
      %807 = vmatprep.subr.mxu0 0.0
      %808 = vmatpush1.msra.mxu0 0.0
      %809 = vmatprep.subr.mxu0 0.0
      %810 = vmatpush1.msra.mxu0 0.0
      %811 = vmatprep.subr.mxu0 0.0
      %812 = vmatpush1.msra.mxu0 0.0
      %813 = vmatprep.subr.mxu0 0.0
      %814 = vmatpush1.msra.mxu0 0.0
      %815 = vmatprep.subr.mxu0 0.0
      %816 = vmatpush1.msra.mxu0 0.0
      %817 = vmatprep.subr.mxu0 0.0
      %818 = vmatpush1.msra.mxu0 0.0
      %819 = vmatprep.subr.mxu0 0.0
      %820 = vmatpush1.msra.mxu0 0.0
      %821 = vmatprep.subr.mxu0 0.0
      %822 = vmatpush1.msra.mxu0 0.0
      %823 = vmatprep.subr.mxu0 0.0
      %824 = vmatpush1.msra.mxu0 0.0
      %825 = vmatprep.subr.mxu0 0.0
      %826 = vmatpush1.msra.mxu0 0.0
      %827 = vmatprep.subr.mxu0 0.0
      %828 = vmatpush1.msra.mxu0 0.0
      %829 = vmatprep.mubr.f32.mxu0 0.0
      %830 = vmatmul.mubr.f32.gmra.mrb[0].mxu0 %v763
      %v831 = vpop.f32.mrb[0].mxu0
      %v832 = vadd.f32 0.0, %v831
      %v833 = vpop.f32.mrb[0].mxu0
      %834 = vdwg.mxu0
      %v835 = vadd.f32 %v759, %v832
      %v836 = vxor.u32 %v835, 2147483648
      %v837 = vmul.f32 %v836, 1.442695
      %v838 = vpow.pop %v837
      %v839 = vadd.f32 %v838, 1.0
      %v840 = vrcp.pop %v839
      %v841 = vmul.f32 1.0, %v840
      %v842 = vadd.f32 %v832, %v163
      %844 = vrot.lane.b32.xlu0 %v842, 64
      %v845 = vpop.permute.xlu0 %844
      %v847 = vmul.f32 %v841, %v845
      %849 = vrot.lane.b32.xlu0 %v847, 64
      %v850 = vpop.permute.xlu0 %849
      %v852 = vadd.f32 %v759, %v850
      %v853 = vtanh.pop %v852
      %v854 = vsub.f32 1.0, %v841
      %856 = vrot.lane.b32.xlu0 %v853, 96
      %v857 = vpop.permute.xlu0 %856
      %v859 = vmul.f32 %v854, %v857
      %v860 = vmul.f32 %v841, %v756
      %v861 = vadd.f32 %v859, %v860
      %v864 = vunpack.c.l.s4 1983009808
      %v865 = vunpack.c.0.s8 %v864
      %v866 = vlaneseq
      %v867 = vshrl.u32 %v866, 7
      %v868 = vsub.s32 %v865, %v867
      %v869 = vrot.slane %v861, %v868
      %870 = vrot.lane.b32.xlu0 %v869, 32
      %v871 = vpop.permute.xlu0 %870
      %873 = vst.msk [vmem:[#allocation2 + $0x2] sm:$0x3] %vm421, %v871
      %s874 = scalar_lea.vmem [#allocation3], 14
      %v875 = vld [vmem:[%s874] sm:$0x3]
      %876 = vrot.lane.b32.xlu0 %v861, 96
      %v877 = vpop.permute.xlu0 %876
      %v878 = vsel %vm81, %v877, 0
      %880 = vmatprep.subr.mxu0 0.0
      %881 = vmatpush1.msra.mxu0 %v69
      %882 = vmatprep.subr.mxu0 0.0
      %883 = vmatpush1.msra.mxu0 %v70
      %884 = vmatprep.subr.mxu0 0.0
      %885 = vmatpush1.msra.mxu0 %v71
      %886 = vmatprep.subr.mxu0 0.0
      %887 = vmatpush1.msra.mxu0 %v72
      %888 = vmatprep.subr.mxu0 0.0
      %889 = vmatpush1.msra.mxu0 0.0
      %890 = vmatprep.subr.mxu0 0.0
      %891 = vmatpush1.msra.mxu0 0.0
      %892 = vmatprep.subr.mxu0 0.0
      %893 = vmatpush1.msra.mxu0 0.0
      %894 = vmatprep.subr.mxu0 0.0
      %895 = vmatpush1.msra.mxu0 0.0
      %896 = vmatprep.subr.mxu0 0.0
      %897 = vmatpush1.msra.mxu0 0.0
      %898 = vmatprep.subr.mxu0 0.0
      %899 = vmatpush1.msra.mxu0 0.0
      %900 = vmatprep.subr.mxu0 0.0
      %901 = vmatpush1.msra.mxu0 0.0
      %902 = vmatprep.subr.mxu0 0.0
      %903 = vmatpush1.msra.mxu0 0.0
      %904 = vmatprep.subr.mxu0 0.0
      %905 = vmatpush1.msra.mxu0 0.0
      %906 = vmatprep.subr.mxu0 0.0
      %907 = vmatpush1.msra.mxu0 0.0
      %908 = vmatprep.subr.mxu0 0.0
      %909 = vmatpush1.msra.mxu0 0.0
      %910 = vmatprep.subr.mxu0 0.0
      %911 = vmatpush1.msra.mxu0 0.0
      %912 = vmatprep.subr.mxu0 0.0
      %913 = vmatpush1.msra.mxu0 0.0
      %914 = vmatprep.subr.mxu0 0.0
      %915 = vmatpush1.msra.mxu0 0.0
      %916 = vmatprep.subr.mxu0 0.0
      %917 = vmatpush1.msra.mxu0 0.0
      %918 = vmatprep.subr.mxu0 0.0
      %919 = vmatpush1.msra.mxu0 0.0
      %920 = vmatprep.subr.mxu0 0.0
      %921 = vmatpush1.msra.mxu0 0.0
      %922 = vmatprep.subr.mxu0 0.0
      %923 = vmatpush1.msra.mxu0 0.0
      %924 = vmatprep.subr.mxu0 0.0
      %925 = vmatpush1.msra.mxu0 0.0
      %926 = vmatprep.subr.mxu0 0.0
      %927 = vmatpush1.msra.mxu0 0.0
      %928 = vmatprep.subr.mxu0 0.0
      %929 = vmatpush1.msra.mxu0 0.0
      %930 = vmatprep.subr.mxu0 0.0
      %931 = vmatpush1.msra.mxu0 0.0
      %932 = vmatprep.subr.mxu0 0.0
      %933 = vmatpush1.msra.mxu0 0.0
      %934 = vmatprep.subr.mxu0 0.0
      %935 = vmatpush1.msra.mxu0 0.0
      %936 = vmatprep.subr.mxu0 0.0
      %937 = vmatpush1.msra.mxu0 0.0
      %938 = vmatprep.subr.mxu0 0.0
      %939 = vmatpush1.msra.mxu0 0.0
      %940 = vmatprep.subr.mxu0 0.0
      %941 = vmatpush1.msra.mxu0 0.0
      %942 = vmatprep.subr.mxu0 0.0
      %943 = vmatpush1.msra.mxu0 0.0
      %944 = vmatprep.mubr.f32.mxu0 0.0
      %945 = vmatmul.mubr.f32.gmra.mrb[0].mxu0 %v878
      %v946 = vpop.f32.mrb[0].mxu0
      %v947 = vadd.f32 0.0, %v946
      %v948 = vpop.f32.mrb[0].mxu0
      %949 = vdwg.mxu0
      %v950 = vadd.f32 %v875, %v947
      %v951 = vxor.u32 %v950, 2147483648
      %v952 = vmul.f32 %v951, 1.442695
      %v953 = vpow.pop %v952
      %v954 = vadd.f32 %v953, 1.0
      %v955 = vrcp.pop %v954
      %v956 = vmul.f32 1.0, %v955
      %v957 = vadd.f32 %v947, %v163
      %959 = vrot.lane.b32.xlu0 %v957, 64
      %v960 = vpop.permute.xlu0 %959
      %v962 = vmul.f32 %v956, %v960
      %964 = vrot.lane.b32.xlu0 %v962, 64
      %v965 = vpop.permute.xlu0 %964
      %v967 = vadd.f32 %v875, %v965
      %v968 = vtanh.pop %v967
      %v969 = vsub.f32 1.0, %v956
      %971 = vrot.lane.b32.xlu0 %v968, 96
      %v972 = vpop.permute.xlu0 %971
      %v974 = vmul.f32 %v969, %v972
      %v975 = vmul.f32 %v956, %v861
      %v976 = vadd.f32 %v974, %v975
      %v979 = vunpack.c.l.s4 1983009808
      %v980 = vunpack.c.0.s8 %v979
      %v981 = vlaneseq
      %v982 = vshrl.u32 %v981, 7
      %v983 = vsub.s32 %v980, %v982
      %v984 = vrot.slane %v976, %v983
      %985 = vrot.lane.b32.xlu0 %v984, 64
      %v986 = vpop.permute.xlu0 %985
      %988 = vst.msk [vmem:[#allocation2 + $0x2] sm:$0x3] %vm537, %v986
    $region41: #{tpu_custom_call.1} parent=1 // pred_fallthru
      _
    %v989 = vld [vmem:[#allocation2] sm:$0xf]
    %v990 = vld [vmem:[#allocation8] sm:$0xff]
    %v991 = vld [vmem:[#allocation8 + $0x8] sm:$0xff]
    %v992 = vld [vmem:[#allocation8 + $0x10] sm:$0xff]
    %v993 = vld [vmem:[#allocation8 + $0x18] sm:$0xff]
    %v994 = vld [vmem:[#allocation8 + $0x20] sm:$0xff]
    %v995 = vld [vmem:[#allocation8 + $0x28] sm:$0xff]
    %v996 = vld [vmem:[#allocation8 + $0x30] sm:$0xff]
    %v997 = vld [vmem:[#allocation8 + $0x38] sm:$0xff]
    %v998 = vld [vmem:[#allocation8 + $0x40] sm:$0xff]
    %v999 = vld [vmem:[#allocation8 + $0x48] sm:$0xff]
    %v1000 = vld [vmem:[#allocation8 + $0x50] sm:$0xff]
    %v1001 = vld [vmem:[#allocation8 + $0x58] sm:$0xff]
    %v1002 = vld [vmem:[#allocation8 + $0x60] sm:$0xff]
    %v1003 = vld [vmem:[#allocation8 + $0x68] sm:$0xff]
    %v1004 = vld [vmem:[#allocation8 + $0x70] sm:$0xff]
    %v1005 = vld [vmem:[#allocation8 + $0x78] sm:$0xff]
    %v1006 = vld [vmem:[#allocation8 + $0x80] sm:$0xff]
    %v1007 = vld [vmem:[#allocation8 + $0x88] sm:$0xff]
    %v1008 = vld [vmem:[#allocation8 + $0x90] sm:$0xff]
    %v1009 = vld [vmem:[#allocation8 + $0x98] sm:$0xff]
    %v1010 = vld [vmem:[#allocation8 + $0xa0] sm:$0xff]
    %v1011 = vld [vmem:[#allocation8 + $0xa8] sm:$0xff]
    %v1012 = vld [vmem:[#allocation8 + $0xb0] sm:$0xff]
    %v1013 = vld [vmem:[#allocation8 + $0xb8] sm:$0xff]
    %v1014 = vld [vmem:[#allocation8 + $0xc0] sm:$0xff]
    %v1015 = vld [vmem:[#allocation8 + $0xc8] sm:$0xff]
    %v1016 = vld [vmem:[#allocation8 + $0xd0] sm:$0xff]
    %v1017 = vld [vmem:[#allocation8 + $0xd8] sm:$0xff]
    %v1018 = vld [vmem:[#allocation8 + $0xe0] sm:$0xff]
    %v1019 = vld [vmem:[#allocation8 + $0xe8] sm:$0xff]
    %v1020 = vld [vmem:[#allocation8 + $0xf0] sm:$0xff]
    %v1021 = vld [vmem:[#allocation8 + $0xf8] sm:$0xff]
    %v1022 = vld [vmem:[%s5] sm:$0x1]
    %v1024 = vlaneseq
    %v1025 = vshrl.u32 %v1024, 7
    %v1026 = vsub.s32 0, %v1025
    %v1027 = vrot.slane %v1022, %v1026
    %v1031 = vunpack.c.l.s4 1983009808
    %v1032 = vunpack.c.0.s8 %v1031
    %v1033 = vlaneseq
    %v1034 = vshrl.u32 %v1033, 7
    %v1035 = vsub.s32 %v1032, %v1034
    %v1036 = vrot.slane %v989, %v1035
    %v1037 = vcombine.high %v1036, %v1036
    %1040 = vmatprep.subr.mxu0 0.0
    %1041 = vmatpush1.msra.mxu0 %v990
    %1042 = vmatprep.subr.mxu0 0.0
    %1043 = vmatpush1.msra.mxu0 %v991
    %1044 = vmatprep.subr.mxu0 0.0
    %1045 = vmatpush1.msra.mxu0 %v992
    %1046 = vmatprep.subr.mxu0 0.0
    %1047 = vmatpush1.msra.mxu0 %v993
    %1048 = vmatprep.subr.mxu0 0.0
    %1049 = vmatpush1.msra.mxu0 %v994
    %1050 = vmatprep.subr.mxu0 0.0
    %1051 = vmatpush1.msra.mxu0 %v995
    %1052 = vmatprep.subr.mxu0 0.0
    %1053 = vmatpush1.msra.mxu0 %v996
    %1054 = vmatprep.subr.mxu0 0.0
    %1055 = vmatpush1.msra.mxu0 %v997
    %1056 = vmatprep.subr.mxu0 0.0
    %1057 = vmatpush1.msra.mxu0 %v998
    %1058 = vmatprep.subr.mxu0 0.0
    %1059 = vmatpush1.msra.mxu0 %v999
    %1060 = vmatprep.subr.mxu0 0.0
    %1061 = vmatpush1.msra.mxu0 %v1000
    %1062 = vmatprep.subr.mxu0 0.0
    %1063 = vmatpush1.msra.mxu0 %v1001
    %1064 = vmatprep.subr.mxu0 0.0
    %1065 = vmatpush1.msra.mxu0 %v1002
    %1066 = vmatprep.subr.mxu0 0.0
    %1067 = vmatpush1.msra.mxu0 %v1003
    %1068 = vmatprep.subr.mxu0 0.0
    %1069 = vmatpush1.msra.mxu0 %v1004
    %1070 = vmatprep.subr.mxu0 0.0
    %1071 = vmatpush1.msra.mxu0 %v1005
    %1072 = vmatprep.subr.mxu0 0.0
    %1073 = vmatpush1.msra.mxu0 %v1006
    %1074 = vmatprep.subr.mxu0 0.0
    %1075 = vmatpush1.msra.mxu0 %v1007
    %1076 = vmatprep.subr.mxu0 0.0
    %1077 = vmatpush1.msra.mxu0 %v1008
    %1078 = vmatprep.subr.mxu0 0.0
    %1079 = vmatpush1.msra.mxu0 %v1009
    %1080 = vmatprep.subr.mxu0 0.0
    %1081 = vmatpush1.msra.mxu0 %v1010
    %1082 = vmatprep.subr.mxu0 0.0
    %1083 = vmatpush1.msra.mxu0 %v1011
    %1084 = vmatprep.subr.mxu0 0.0
    %1085 = vmatpush1.msra.mxu0 %v1012
    %1086 = vmatprep.subr.mxu0 0.0
    %1087 = vmatpush1.msra.mxu0 %v1013
    %1088 = vmatprep.subr.mxu0 0.0
    %1089 = vmatpush1.msra.mxu0 %v1014
    %1090 = vmatprep.subr.mxu0 0.0
    %1091 = vmatpush1.msra.mxu0 %v1015
    %1092 = vmatprep.subr.mxu0 0.0
    %1093 = vmatpush1.msra.mxu0 %v1016
    %1094 = vmatprep.subr.mxu0 0.0
    %1095 = vmatpush1.msra.mxu0 %v1017
    %1096 = vmatprep.subr.mxu0 0.0
    %1097 = vmatpush1.msra.mxu0 %v1018
    %1098 = vmatprep.subr.mxu0 0.0
    %1099 = vmatpush1.msra.mxu0 %v1019
    %1100 = vmatprep.subr.mxu0 0.0
    %1101 = vmatpush1.msra.mxu0 %v1020
    %1102 = vmatprep.subr.mxu0 0.0
    %1103 = vmatpush1.msra.mxu0 %v1021
    %1104 = vmatprep.mubr.f32.mxu0 %v1037
    %1105 = vmatmul.mubr.f32.gmra.mrb[0].mxu0 %v1036
    %v1106 = vpop.f32.mrb[0].mxu0
    %v1107 = vadd.f32 %v1027, %v1106
    %v1108 = vpop.f32.mrb[0].mxu0
    %1109 = vdwg.mxu0
    %1110 = vst [vmem:[#allocation9] sm:$0x3] %v1107
    // Predicated region
    $region42: #{tpu_custom_call.1} parent=1 // pred_check
      _
    $region43: #{tpu_custom_call.1} parent=1 // pred_check_branch
      %1112 = sbr.rel (0) target = $region45
    $region44: #{tpu_custom_call.1} parent=1 // pred_region
      %s1114 = ssub.s32 32, 32
      %1115 = vsyncadd [#allocation5], %s1114
      %s1117 = sshll.u32 [#allocation9], 4
      %s1118 = int_to_ptr.vmem [resolvable:$true] %s1117
      %1120 = dma.vmem_to_hbm [thread:$0]  %s1118, 32, %s6, [#allocation5]
    $region45: #{tpu_custom_call.1} parent=1 // pred_fallthru
      _
    // Predicated region
    $region46: #{tpu_custom_call.1} parent=1 // pred_check
      _
    $region47: #{tpu_custom_call.1} parent=1 // pred_check_branch
      %1122 = sbr.rel (0) target = $region49
    $region48: #{tpu_custom_call.1} parent=1 // pred_region
      %1123 = dma.done [#allocation5], 32
    $region49: #{tpu_custom_call.1} parent=1 // pred_fallthru
      _
    %1124 = vsyncpa [#allocation4], 1
    %1125 = vsyncpa [#allocation7], 1
    %1126 = vsyncpa [#allocation5], 1

</llo_original>
